<compile_context>
chip_gen: v7x
topology: tpu7x:2x2x1
jax: 0.10.0
libtpu: 0.0.40
codegen_flags: <defaults>
</compile_context>

<pallas_src>
import functools

import jax
import jax.numpy as jnp
from jax import lax
from jax.experimental import pallas as pl
from jax.experimental.pallas import tpu as pltpu

LANE = 128
SUBLANE = 8


def _round_up(x, m):
    return ((x + m - 1) // m) * m


def _repconv_kernel(x_lo_ref, x_hi_ref, w_ref, b_ref, o_ref, patch_ref, *, K):
    """One (Cout-tile, image, row-tile) grid step.

    x_lo_ref:  (1, TH,   Wp, Cp)   body rows of the padded input   (bf16)
    x_hi_ref:  (1, HALO, Wp, Cp)   halo rows just below the body   (bf16)
    w_ref:     (K*K*Cp, TCout)     merged weights (im2col order)   (bf16)
    b_ref:     (1, TCout)          merged bias                     (f32)
    o_ref:     (1, TH, W, TCout)   output tile                     (f32)
    patch_ref: (TH, W, K*K*Cp)     VMEM scratch: im2col patch      (bf16)
    """
    TH = x_lo_ref.shape[1]
    Cp = x_lo_ref.shape[3]
    W = o_ref.shape[2]
    TCout = o_ref.shape[3]

    # Build the im2col patch straight from the body/halo refs (no separate
    # window copy).  Each (kh, kw) tap writes one lane-aligned Cp-wide chunk.
    for kh in range(K):
        for kw in range(K):
            tap = kh * K + kw
            lo_rows = TH - kh          # output rows whose tap row is in x_lo
            patch_ref[0:lo_rows, :, tap * Cp:(tap + 1) * Cp] = (
                x_lo_ref[0, kh:TH, kw:kw + W, :])
            if kh > 0:                 # remaining rows come from the halo
                patch_ref[lo_rows:TH, :, tap * Cp:(tap + 1) * Cp] = (
                    x_hi_ref[0, 0:kh, kw:kw + W, :])

    # Single large-contraction MXU matmul; bias fused into the one store pass.
    patch = patch_ref[...].reshape(TH * W, K * K * Cp)
    acc = jnp.dot(patch, w_ref[...], preferred_element_type=jnp.float32)
    out = acc + b_ref[...]                       # (TH*W, TCout) + (1, TCout)
    o_ref[0] = out.reshape(TH, W, TCout).astype(o_ref.dtype)


def _vmem_capacity_bytes(default=64 * 1024 * 1024):
    """Physical VMEM per TensorCore; falls back to the v7x minimum (64 MiB)."""
    try:
        cap = getattr(pltpu.get_tpu_info(), "vmem_capacity_bytes", None)
        if cap:
            return int(cap)
    except Exception:
        pass
    return default


def _tile_vmem_bytes(th, halo, wp_in, w_out, cin_p, kk_cin, tcout):
    """Rough per-grid-step VMEM footprint (double-buffered inputs/outputs)."""
    inp = 2 * (th + halo) * wp_in * cin_p * 2      # bf16 body + halo tiles
    wgt = 2 * kk_cin * tcout * 2                   # bf16 weight tile
    out = 2 * th * w_out * tcout * 4               # f32 output tile
    patch = th * w_out * kk_cin * 2                # bf16 im2col scratch
    return inp + wgt + out + patch


def _choose_row_tile(H, halo, wp_in, w_out, cin_p, kk_cin, tcout, budget):
    """Largest divisor of H that is a multiple of `halo` and fits the budget."""
    candidates = [t for t in range(H, 0, -1) if H % t == 0 and t % halo == 0]
    if not candidates:
        raise ValueError(
            f"no row tile divides H={H} and is a multiple of halo={halo}")
    for th in candidates:
        if _tile_vmem_bytes(th, halo, wp_in, w_out, cin_p, kk_cin, tcout) <= budget:
            return th
    return candidates[-1]   # smallest legal tile even if over budget


def repconv_forward(x_nchw, branch_weights, branch_biases, tile_h=None):
    """RepConv forward: sum of same-shape conv branches (stride=1, groups=1,
    dilation=1, odd square kernels, "same" padding).

    Args:
      x_nchw:         (N, Cin, H, W) float32
      branch_weights: list of (Cout, Cin, k, k) float32
      branch_biases:  list of (Cout,) float32
    Returns:
      (N, Cout, H, W) float32
    """
    N, Cin, H, W = map(int, x_nchw.shape)
    K = max(int(w.shape[-1]) for w in branch_weights)
    Cout = int(branch_weights[0].shape[0])

    # --- glue: merge branches into one KxK conv (RepConv._create_merged_conv).
    merged_w = jnp.zeros((Cout, Cin, K, K), jnp.float32)
    merged_b = jnp.zeros((Cout,), jnp.float32)
    for w, b in zip(branch_weights, branch_biases):
        k = int(w.shape[-1])
        p = (K - k) // 2
        merged_w = merged_w + jnp.pad(w.astype(jnp.float32),
                                      ((0, 0), (0, 0), (p, p), (p, p)))
        merged_b = merged_b + b.astype(jnp.float32)

    pad = K // 2
    halo = max(K - 1, 1)               # rows fetched from the next row block
    extra_rows = halo - (K - 1)        # one extra zero row when K == 1

    # Lane/sublane-friendly padded sizes.
    Cin_p = _round_up(Cin, LANE)       # lane-dense input channels / tap chunks
    Cout_p = _round_up(Cout, LANE)     # lane-dense output channels
    W_out = _round_up(W, SUBLANE)      # sublane-aligned output width
    Wp_in = W_out + 2 * pad            # padded input width seen by the kernel
    kk_cin = K * K * Cin_p

    TCout = 256 if (Cout_p % 256 == 0) else 128   # MXU-width output tile

    # Generation-aware VMEM budget (v5e/v6e 128 MiB, v7x 64 MiB per core).
    vmem_cap = _vmem_capacity_bytes()
    vmem_limit = min((vmem_cap * 3) // 4, 112 * 1024 * 1024)

    if tile_h is None:
        tile_h = _choose_row_tile(H, halo, Wp_in, W_out, Cin_p, kk_cin, TCout,
                                  budget=vmem_limit - 4 * 1024 * 1024)
    TH = int(tile_h)
    if H % TH != 0 or TH % halo != 0:
        raise ValueError(f"tile_h={TH} must divide H={H} and be a multiple of {halo}")

    # NCHW -> NHWC, bf16 for the MXU; spatial "same" padding plus channel /
    # width alignment padding (padded channels get zero weight so they're inert).
    # TODO(synk): this host-side pad/transpose/cast is 1-2 extra HBM passes over
    # x; allow_input_fusion or in-kernel edge masking could fold it into the call.
    x_nhwc = jnp.transpose(x_nchw, (0, 2, 3, 1)).astype(jnp.bfloat16)
    x_pad = jnp.pad(x_nhwc, ((0, 0),
                             (pad, pad + extra_rows),
                             (pad, pad + (W_out - W)),
                             (0, Cin_p - Cin)))

    # (Cout, Cin, K, K) -> (K*K*Cin_p, Cout_p), matching the im2col tap order.
    w_kkio = jnp.transpose(merged_w, (2, 3, 1, 0))
    w_kkio = jnp.pad(w_kkio, ((0, 0), (0, 0),
                              (0, Cin_p - Cin), (0, Cout_p - Cout)))
    w_2d = w_kkio.reshape(kk_cin, Cout_p).astype(jnp.bfloat16)
    b_2d = jnp.pad(merged_b, (0, Cout_p - Cout)).reshape(1, Cout_p)

    # Cout tile is the SLOWEST grid axis so the weight/bias blocks (keyed only
    # on it) are DMA'd once per Cout tile and stay resident across all (n, r).
    grid = (Cout_p // TCout, N, H // TH)
    halo_blocks_per_tile = TH // halo

    out_nhwc = pl.pallas_call(
        functools.partial(_repconv_kernel, K=K),
        out_shape=jax.ShapeDtypeStruct((N, H, W_out, Cout_p), jnp.float32),
        grid_spec=pltpu.PrefetchScalarGridSpec(
            num_scalar_prefetch=0,
            grid=grid,
            in_specs=[
                # TH body rows of the padded input.
                pl.BlockSpec((1, TH, Wp_in, Cin_p),
                             lambda co, n, r: (n, r, 0, 0)),
                # (K-1) halo rows immediately below the body rows.
                pl.BlockSpec((1, halo, Wp_in, Cin_p),
                             lambda co, n, r: (n, (r + 1) * halo_blocks_per_tile, 0, 0)),
                # Weights / bias: keyed only on the slowest axis -> resident.
                pl.BlockSpec((kk_cin, TCout), lambda co, n, r: (0, co)),
                pl.BlockSpec((1, TCout), lambda co, n, r: (0, co)),
            ],
            out_specs=pl.BlockSpec((1, TH, W_out, TCout),
                                   lambda co, n, r: (n, r, 0, co)),
            scratch_shapes=[
                pltpu.VMEM((TH, W_out, kk_cin), jnp.bfloat16),   # im2col patch
            ],
        ),
        compiler_params=pltpu.CompilerParams(
            # Every grid point writes its own output tile (no cross-step
            # reduction), so all axes can shard across TensorCores; the (n, r)
            # axes give megacore a large parallel extent even when the Cout
            # axis has a single tile.
            dimension_semantics=("parallel", "parallel", "parallel"),
            vmem_limit_bytes=int(vmem_limit),
        ),
    )(x_pad, x_pad, w_2d, b_2d)

    # Drop width/channel padding, back to NCHW.
    # TODO(synk): if the consumer accepts padded NHWC, this slice + transpose
    # (two extra HBM passes over the output) can be dropped entirely.
    return jnp.transpose(out_nhwc[:, :, :W, :Cout], (0, 3, 1, 2))


def _reference_sum_of_branches(x_nchw, branch_weights, branch_biases):
    """Pure-JAX reference: literal sum of per-branch conv2d outputs (NCHW, f32)."""
    out = None
    for w, b in zip(branch_weights, branch_biases):
        k = w.shape[-1]
        p = k // 2
        y = lax.conv_general_dilated(
            x_nchw, w, window_strides=(1, 1), padding=[(p, p), (p, p)],
            dimension_numbers=("NCHW", "OIHW", "NCHW"))
        y = y + b.reshape(1, -1, 1, 1)
        out = y if out is None else out + y
    return out


if __name__ == "__main__":
    key = jax.random.PRNGKey(0)
    N, Cin, Cout, H, W = 2, 4, 8, 16, 16
    kernel_sizes = [3, 1]          # typical RepConv: 3x3 branch + 1x1 branch

    branch_weights, branch_biases = [], []
    for k in kernel_sizes:
        key, kw_key, kb_key = jax.random.split(key, 3)
        fan_in = Cin * k * k
        bound = 1.0 / (fan_in ** 0.5)
        branch_weights.append(
            jax.random.uniform(kw_key, (Cout, Cin, k, k), jnp.float32,
                               minval=-bound, maxval=bound))
        branch_biases.append(
            jax.random.uniform(kb_key, (Cout,), jnp.float32,
                               minval=-bound, maxval=bound))

    key, x_key = jax.random.split(key)
    x = jax.random.normal(x_key, (N, Cin, H, W), jnp.float32)

    # tile_h=8 -> 2 row tiles per image: exercises the halo path and pipelining.
    out = repconv_forward(x, branch_weights, branch_biases, tile_h=8)
    out = jax.block_until_ready(out)

    ref = _reference_sum_of_branches(x, branch_weights, branch_biases)
    assert out.shape == (N, Cout, H, W)
    # MXU inputs are bf16 (f32 accumulation), so allow bf16-level error vs the
    # f32 sum-of-branches reference.
    assert jnp.max(jnp.abs(out - ref)) < 5e-2, "Pallas RepConv mismatch vs reference"

    print("KERNEL_OK")
</pallas_src>

<mosaic_0001>
module attributes {stable_mosaic.version = 11 : i64} {
  func.func @_repconv_kernel(%arg0: i32, %arg1: i32, %arg2: i32, %arg3: memref<1x8x18x128xbf16, #tpu.memory_space<vmem>>, %arg4: memref<1x2x18x128xbf16, #tpu.memory_space<vmem>>, %arg5: memref<1152x128xbf16, #tpu.memory_space<vmem>>, %arg6: memref<1x128xf32, #tpu.memory_space<vmem>>, %arg7: memref<1x8x16x128xf32, #tpu.memory_space<vmem>>, %arg8: memref<8x16x1152xbf16, #tpu.memory_space<vmem>>) attributes {dimension_semantics = [#tpu.dimension_semantics<parallel>, #tpu.dimension_semantics<parallel>, #tpu.dimension_semantics<parallel>], iteration_bounds = array<i64: 1, 2, 2>, scalar_prefetch = 0 : i64, scratch_operands = 1 : i64, tpu.core_type = #tpu.core_type<tc>, window_params = [{transform_indices = @transform_0, window_bounds = array<i64: 1, 8, 18, 128>}, {transform_indices = @transform_1, window_bounds = array<i64: 1, 2, 18, 128>}, {transform_indices = @transform_2, window_bounds = array<i64: 1152, 128>}, {transform_indices = @transform_3, window_bounds = array<i64: 1, 128>}, {transform_indices = @transform_4, window_bounds = array<i64: 1, 8, 16, 128>}]} {
    %c0 = arith.constant 0 : index
    %c0_0 = arith.constant 0 : index
    %c0_1 = arith.constant 0 : index
    %c0_2 = arith.constant 0 : index
    %0 = vector.load %arg3[%c0, %c0_0, %c0_1, %c0_2] : memref<1x8x18x128xbf16, #tpu.memory_space<vmem>>, vector<1x8x16x128xbf16>
    %1 = vector.shape_cast %0 : vector<1x8x16x128xbf16> to vector<8x16x128xbf16>
    %c0_3 = arith.constant 0 : index
    %c0_4 = arith.constant 0 : index
    %c0_5 = arith.constant 0 : index
    %2 = vector.load %arg8[%c0_3, %c0_4, %c0_5] : memref<8x16x1152xbf16, #tpu.memory_space<vmem>>, vector<8x16x128xbf16>
    tpu.vector_store %arg8[%c0_3, %c0_4, %c0_5], %1 {strides = array<i32>} : memref<8x16x1152xbf16, #tpu.memory_space<vmem>>, vector<8x16x128xbf16>,
    %c0_6 = arith.constant 0 : index
    %c0_7 = arith.constant 0 : index
    %c1 = arith.constant 1 : index
    %c0_8 = arith.constant 0 : index
    %3 = vector.load %arg3[%c0_6, %c0_7, %c1, %c0_8] : memref<1x8x18x128xbf16, #tpu.memory_space<vmem>>, vector<1x8x16x128xbf16>
    %4 = vector.shape_cast %3 : vector<1x8x16x128xbf16> to vector<8x16x128xbf16>
    %c0_9 = arith.constant 0 : index
    %c0_10 = arith.constant 0 : index
    %c128 = arith.constant 128 : index
    %5 = vector.load %arg8[%c0_9, %c0_10, %c128] : memref<8x16x1152xbf16, #tpu.memory_space<vmem>>, vector<8x16x128xbf16>
    tpu.vector_store %arg8[%c0_9, %c0_10, %c128], %4 {strides = array<i32>} : memref<8x16x1152xbf16, #tpu.memory_space<vmem>>, vector<8x16x128xbf16>,
    %c0_11 = arith.constant 0 : index
    %c0_12 = arith.constant 0 : index
    %c2 = arith.constant 2 : index
    %c0_13 = arith.constant 0 : index
    %6 = vector.load %arg3[%c0_11, %c0_12, %c2, %c0_13] : memref<1x8x18x128xbf16, #tpu.memory_space<vmem>>, vector<1x8x16x128xbf16>
    %7 = vector.shape_cast %6 : vector<1x8x16x128xbf16> to vector<8x16x128xbf16>
    %c0_14 = arith.constant 0 : index
    %c0_15 = arith.constant 0 : index
    %c256 = arith.constant 256 : index
    %8 = vector.load %arg8[%c0_14, %c0_15, %c256] : memref<8x16x1152xbf16, #tpu.memory_space<vmem>>, vector<8x16x128xbf16>
    tpu.vector_store %arg8[%c0_14, %c0_15, %c256], %7 {strides = array<i32>} : memref<8x16x1152xbf16, #tpu.memory_space<vmem>>, vector<8x16x128xbf16>,
    %c0_16 = arith.constant 0 : index
    %c1_17 = arith.constant 1 : index
    %c0_18 = arith.constant 0 : index
    %c0_19 = arith.constant 0 : index
    %9 = vector.load %arg3[%c0_16, %c1_17, %c0_18, %c0_19] : memref<1x8x18x128xbf16, #tpu.memory_space<vmem>>, vector<1x7x16x128xbf16>
    %10 = vector.shape_cast %9 : vector<1x7x16x128xbf16> to vector<7x16x128xbf16>
    %c0_20 = arith.constant 0 : index
    %c0_21 = arith.constant 0 : index
    %c384 = arith.constant 384 : index
    %11 = vector.load %arg8[%c0_20, %c0_21, %c384] : memref<8x16x1152xbf16, #tpu.memory_space<vmem>>, vector<7x16x128xbf16>
    tpu.vector_store %arg8[%c0_20, %c0_21, %c384], %10 {strides = array<i32>} : memref<8x16x1152xbf16, #tpu.memory_space<vmem>>, vector<7x16x128xbf16>,
    %c0_22 = arith.constant 0 : index
    %c0_23 = arith.constant 0 : index
    %c0_24 = arith.constant 0 : index
    %c0_25 = arith.constant 0 : index
    %12 = vector.load %arg4[%c0_22, %c0_23, %c0_24, %c0_25] : memref<1x2x18x128xbf16, #tpu.memory_space<vmem>>, vector<1x1x16x128xbf16>
    %13 = vector.shape_cast %12 : vector<1x1x16x128xbf16> to vector<1x16x128xbf16>
    %c7 = arith.constant 7 : index
    %c0_26 = arith.constant 0 : index
    %c384_27 = arith.constant 384 : index
    %14 = vector.load %arg8[%c7, %c0_26, %c384_27] : memref<8x16x1152xbf16, #tpu.memory_space<vmem>>, vector<1x16x128xbf16>
    tpu.vector_store %arg8[%c7, %c0_26, %c384_27], %13 {strides = array<i32>} : memref<8x16x1152xbf16, #tpu.memory_space<vmem>>, vector<1x16x128xbf16>,
    %c0_28 = arith.constant 0 : index
    %c1_29 = arith.constant 1 : index
    %c1_30 = arith.constant 1 : index
    %c0_31 = arith.constant 0 : index
    %15 = vector.load %arg3[%c0_28, %c1_29, %c1_30, %c0_31] : memref<1x8x18x128xbf16, #tpu.memory_space<vmem>>, vector<1x7x16x128xbf16>
    %16 = vector.shape_cast %15 : vector<1x7x16x128xbf16> to vector<7x16x128xbf16>
    %c0_32 = arith.constant 0 : index
    %c0_33 = arith.constant 0 : index
    %c512 = arith.constant 512 : index
    %17 = vector.load %arg8[%c0_32, %c0_33, %c512] : memref<8x16x1152xbf16, #tpu.memory_space<vmem>>, vector<7x16x128xbf16>
    tpu.vector_store %arg8[%c0_32, %c0_33, %c512], %16 {strides = array<i32>} : memref<8x16x1152xbf16, #tpu.memory_space<vmem>>, vector<7x16x128xbf16>,
    %c0_34 = arith.constant 0 : index
    %c0_35 = arith.constant 0 : index
    %c1_36 = arith.constant 1 : index
    %c0_37 = arith.constant 0 : index
    %18 = vector.load %arg4[%c0_34, %c0_35, %c1_36, %c0_37] : memref<1x2x18x128xbf16, #tpu.memory_space<vmem>>, vector<1x1x16x128xbf16>
    %19 = vector.shape_cast %18 : vector<1x1x16x128xbf16> to vector<1x16x128xbf16>
    %c7_38 = arith.constant 7 : index
    %c0_39 = arith.constant 0 : index
    %c512_40 = arith.constant 512 : index
    %20 = vector.load %arg8[%c7_38, %c0_39, %c512_40] : memref<8x16x1152xbf16, #tpu.memory_space<vmem>>, vector<1x16x128xbf16>
    tpu.vector_store %arg8[%c7_38, %c0_39, %c512_40], %19 {strides = array<i32>} : memref<8x16x1152xbf16, #tpu.memory_space<vmem>>, vector<1x16x128xbf16>,
    %c0_41 = arith.constant 0 : index
    %c1_42 = arith.constant 1 : index
    %c2_43 = arith.constant 2 : index
    %c0_44 = arith.constant 0 : index
    %21 = vector.load %arg3[%c0_41, %c1_42, %c2_43, %c0_44] : memref<1x8x18x128xbf16, #tpu.memory_space<vmem>>, vector<1x7x16x128xbf16>
    %22 = vector.shape_cast %21 : vector<1x7x16x128xbf16> to vector<7x16x128xbf16>
    %c0_45 = arith.constant 0 : index
    %c0_46 = arith.constant 0 : index
    %c640 = arith.constant 640 : index
    %23 = vector.load %arg8[%c0_45, %c0_46, %c640] : memref<8x16x1152xbf16, #tpu.memory_space<vmem>>, vector<7x16x128xbf16>
    tpu.vector_store %arg8[%c0_45, %c0_46, %c640], %22 {strides = array<i32>} : memref<8x16x1152xbf16, #tpu.memory_space<vmem>>, vector<7x16x128xbf16>,
    %c0_47 = arith.constant 0 : index
    %c0_48 = arith.constant 0 : index
    %c2_49 = arith.constant 2 : index
    %c0_50 = arith.constant 0 : index
    %24 = vector.load %arg4[%c0_47, %c0_48, %c2_49, %c0_50] : memref<1x2x18x128xbf16, #tpu.memory_space<vmem>>, vector<1x1x16x128xbf16>
    %25 = vector.shape_cast %24 : vector<1x1x16x128xbf16> to vector<1x16x128xbf16>
    %c7_51 = arith.constant 7 : index
    %c0_52 = arith.constant 0 : index
    %c640_53 = arith.constant 640 : index
    %26 = vector.load %arg8[%c7_51, %c0_52, %c640_53] : memref<8x16x1152xbf16, #tpu.memory_space<vmem>>, vector<1x16x128xbf16>
    tpu.vector_store %arg8[%c7_51, %c0_52, %c640_53], %25 {strides = array<i32>} : memref<8x16x1152xbf16, #tpu.memory_space<vmem>>, vector<1x16x128xbf16>,
    %c0_54 = arith.constant 0 : index
    %c2_55 = arith.constant 2 : index
    %c0_56 = arith.constant 0 : index
    %c0_57 = arith.constant 0 : index
    %27 = vector.load %arg3[%c0_54, %c2_55, %c0_56, %c0_57] : memref<1x8x18x128xbf16, #tpu.memory_space<vmem>>, vector<1x6x16x128xbf16>
    %28 = vector.shape_cast %27 : vector<1x6x16x128xbf16> to vector<6x16x128xbf16>
    %c0_58 = arith.constant 0 : index
    %c0_59 = arith.constant 0 : index
    %c768 = arith.constant 768 : index
    %29 = vector.load %arg8[%c0_58, %c0_59, %c768] : memref<8x16x1152xbf16, #tpu.memory_space<vmem>>, vector<6x16x128xbf16>
    tpu.vector_store %arg8[%c0_58, %c0_59, %c768], %28 {strides = array<i32>} : memref<8x16x1152xbf16, #tpu.memory_space<vmem>>, vector<6x16x128xbf16>,
    %c0_60 = arith.constant 0 : index
    %c0_61 = arith.constant 0 : index
    %c0_62 = arith.constant 0 : index
    %c0_63 = arith.constant 0 : index
    %30 = vector.load %arg4[%c0_60, %c0_61, %c0_62, %c0_63] : memref<1x2x18x128xbf16, #tpu.memory_space<vmem>>, vector<1x2x16x128xbf16>
    %31 = vector.shape_cast %30 : vector<1x2x16x128xbf16> to vector<2x16x128xbf16>
    %c6 = arith.constant 6 : index
    %c0_64 = arith.constant 0 : index
    %c768_65 = arith.constant 768 : index
    %32 = vector.load %arg8[%c6, %c0_64, %c768_65] : memref<8x16x1152xbf16, #tpu.memory_space<vmem>>, vector<2x16x128xbf16>
    tpu.vector_store %arg8[%c6, %c0_64, %c768_65], %31 {strides = array<i32>} : memref<8x16x1152xbf16, #tpu.memory_space<vmem>>, vector<2x16x128xbf16>,
    %c0_66 = arith.constant 0 : index
    %c2_67 = arith.constant 2 : index
    %c1_68 = arith.constant 1 : index
    %c0_69 = arith.constant 0 : index
    %33 = vector.load %arg3[%c0_66, %c2_67, %c1_68, %c0_69] : memref<1x8x18x128xbf16, #tpu.memory_space<vmem>>, vector<1x6x16x128xbf16>
    %34 = vector.shape_cast %33 : vector<1x6x16x128xbf16> to vector<6x16x128xbf16>
    %c0_70 = arith.constant 0 : index
    %c0_71 = arith.constant 0 : index
    %c896 = arith.constant 896 : index
    %35 = vector.load %arg8[%c0_70, %c0_71, %c896] : memref<8x16x1152xbf16, #tpu.memory_space<vmem>>, vector<6x16x128xbf16>
    tpu.vector_store %arg8[%c0_70, %c0_71, %c896], %34 {strides = array<i32>} : memref<8x16x1152xbf16, #tpu.memory_space<vmem>>, vector<6x16x128xbf16>,
    %c0_72 = arith.constant 0 : index
    %c0_73 = arith.constant 0 : index
    %c1_74 = arith.constant 1 : index
    %c0_75 = arith.constant 0 : index
    %36 = vector.load %arg4[%c0_72, %c0_73, %c1_74, %c0_75] : memref<1x2x18x128xbf16, #tpu.memory_space<vmem>>, vector<1x2x16x128xbf16>
    %37 = vector.shape_cast %36 : vector<1x2x16x128xbf16> to vector<2x16x128xbf16>
    %c6_76 = arith.constant 6 : index
    %c0_77 = arith.constant 0 : index
    %c896_78 = arith.constant 896 : index
    %38 = vector.load %arg8[%c6_76, %c0_77, %c896_78] : memref<8x16x1152xbf16, #tpu.memory_space<vmem>>, vector<2x16x128xbf16>
    tpu.vector_store %arg8[%c6_76, %c0_77, %c896_78], %37 {strides = array<i32>} : memref<8x16x1152xbf16, #tpu.memory_space<vmem>>, vector<2x16x128xbf16>,
    %c0_79 = arith.constant 0 : index
    %c2_80 = arith.constant 2 : index
    %c2_81 = arith.constant 2 : index
    %c0_82 = arith.constant 0 : index
    %39 = vector.load %arg3[%c0_79, %c2_80, %c2_81, %c0_82] : memref<1x8x18x128xbf16, #tpu.memory_space<vmem>>, vector<1x6x16x128xbf16>
    %40 = vector.shape_cast %39 : vector<1x6x16x128xbf16> to vector<6x16x128xbf16>
    %c0_83 = arith.constant 0 : index
    %c0_84 = arith.constant 0 : index
    %c1024 = arith.constant 1024 : index
    %41 = vector.load %arg8[%c0_83, %c0_84, %c1024] : memref<8x16x1152xbf16, #tpu.memory_space<vmem>>, vector<6x16x128xbf16>
    tpu.vector_store %arg8[%c0_83, %c0_84, %c1024], %40 {strides = array<i32>} : memref<8x16x1152xbf16, #tpu.memory_space<vmem>>, vector<6x16x128xbf16>,
    %c0_85 = arith.constant 0 : index
    %c0_86 = arith.constant 0 : index
    %c2_87 = arith.constant 2 : index
    %c0_88 = arith.constant 0 : index
    %42 = vector.load %arg4[%c0_85, %c0_86, %c2_87, %c0_88] : memref<1x2x18x128xbf16, #tpu.memory_space<vmem>>, vector<1x2x16x128xbf16>
    %43 = vector.shape_cast %42 : vector<1x2x16x128xbf16> to vector<2x16x128xbf16>
    %c6_89 = arith.constant 6 : index
    %c0_90 = arith.constant 0 : index
    %c1024_91 = arith.constant 1024 : index
    %44 = vector.load %arg8[%c6_89, %c0_90, %c1024_91] : memref<8x16x1152xbf16, #tpu.memory_space<vmem>>, vector<2x16x128xbf16>
    tpu.vector_store %arg8[%c6_89, %c0_90, %c1024_91], %43 {strides = array<i32>} : memref<8x16x1152xbf16, #tpu.memory_space<vmem>>, vector<2x16x128xbf16>,
    %c0_92 = arith.constant 0 : index
    %c0_93 = arith.constant 0 : index
    %c0_94 = arith.constant 0 : index
    %45 = vector.load %arg8[%c0_92, %c0_93, %c0_94] : memref<8x16x1152xbf16, #tpu.memory_space<vmem>>, vector<8x16x1152xbf16>
    %46 = vector.shape_cast %45 : vector<8x16x1152xbf16> to vector<128x1152xbf16>
    %c0_95 = arith.constant 0 : index
    %c0_96 = arith.constant 0 : index
    %47 = vector.load %arg5[%c0_95, %c0_96] : memref<1152x128xbf16, #tpu.memory_space<vmem>>, vector<1152x128xbf16>
    %cst = arith.constant dense<0.000000e+00> : vector<128x128xf32>
    %48 = tpu.matmul %46, %47, %cst {dimension_numbers = #tpu.dot_dimension_numbers<[1], [0], [0], [1], [0, 0, 1, 1], [], []>} : vector<128x1152xbf16>, vector<1152x128xbf16>, vector<128x128xf32> -> vector<128x128xf32>
    %c0_97 = arith.constant 0 : index
    %c0_98 = arith.constant 0 : index
    %49 = vector.load %arg6[%c0_97, %c0_98] : memref<1x128xf32, #tpu.memory_space<vmem>>, vector<1x128xf32>
    %50 = vector.broadcast %49 : vector<1x128xf32> to vector<128x128xf32>
    %51 = arith.addf %48, %50 : vector<128x128xf32>
    %52 = vector.shape_cast %51 : vector<128x128xf32> to vector<8x16x128xf32>
    %c0_99 = arith.constant 0 : index
    %c0_100 = arith.constant 0 : index
    %c0_101 = arith.constant 0 : index
    %c0_102 = arith.constant 0 : index
    %53 = vector.load %arg7[%c0_99, %c0_100, %c0_101, %c0_102] : memref<1x8x16x128xf32, #tpu.memory_space<vmem>>, vector<1x8x16x128xf32>
    %54 = vector.shape_cast %53 : vector<1x8x16x128xf32> to vector<8x16x128xf32>
    %55 = vector.shape_cast %52 : vector<8x16x128xf32> to vector<1x8x16x128xf32>
    tpu.vector_store %arg7[%c0_99, %c0_100, %c0_101, %c0_102], %55 {strides = array<i32>} : memref<1x8x16x128xf32, #tpu.memory_space<vmem>>, vector<1x8x16x128xf32>,
    return
  }
  func.func @transform_0(%arg0: i32, %arg1: i32, %arg2: i32) -> (i32, i32, i32, i32) {
    %c0_i32 = arith.constant 0 : i32
    %c0_i32_0 = arith.constant 0 : i32
    %c0_i32_1 = arith.constant 0 : i32
    return %arg1, %arg2, %c0_i32, %c0_i32_0 : i32, i32, i32, i32
  }
  func.func @transform_1(%arg0: i32, %arg1: i32, %arg2: i32) -> (i32, i32, i32, i32) {
    %c1_i32 = arith.constant 1 : i32
    %0 = arith.addi %arg2, %c1_i32 : i32
    %c4_i32 = arith.constant 4 : i32
    %1 = arith.muli %0, %c4_i32 : i32
    %c0_i32 = arith.constant 0 : i32
    %c0_i32_0 = arith.constant 0 : i32
    %c0_i32_1 = arith.constant 0 : i32
    return %arg1, %1, %c0_i32, %c0_i32_0 : i32, i32, i32, i32
  }
  func.func @transform_2(%arg0: i32, %arg1: i32, %arg2: i32) -> (i32, i32) {
    %c0_i32 = arith.constant 0 : i32
    %c0_i32_0 = arith.constant 0 : i32
    return %c0_i32, %arg0 : i32, i32
  }
  func.func @transform_3(%arg0: i32, %arg1: i32, %arg2: i32) -> (i32, i32) {
    %c0_i32 = arith.constant 0 : i32
    %c0_i32_0 = arith.constant 0 : i32
    return %c0_i32, %arg0 : i32, i32
  }
  func.func @transform_4(%arg0: i32, %arg1: i32, %arg2: i32) -> (i32, i32, i32, i32) {
    %c0_i32 = arith.constant 0 : i32
    %c0_i32_0 = arith.constant 0 : i32
    return %arg1, %arg2, %c0_i32, %arg0 : i32, i32, i32, i32
  }
}

</mosaic_0001>

<llo_original>
// kernel: tpu_custom_call.1
$region0: #{tpu_custom_call.1}
  #allocation0 [shape = 'u32[]', space=smem, size = 0x4, offset = 0x4, fixed_abs, tag = 'smem constant byte address 0x4 - core index']
  #allocation1 [shape = 'u32[144,128]{1,0:T(1,128)}', space=vmem, size = 0x12000, scoped, tag = 'internal scratch']
  #allocation2 [shape = 'bf16[8,16,1152]{2,1,0:T(16,128)(2,1)}', space=vmem, size = 0x48000, scoped, tag = 'scratch operand']
  %s0 = inlined_call_operand.vmem [shape: bf16[2,18,18,128], index: 0, kind: input, shape index: {}]
  %s1 = inlined_call_operand.vmem [shape: bf16[2,18,18,128], index: 1, kind: input, shape index: {}]
  %s2 = inlined_call_operand.vmem [shape: bf16[1152,128], index: 2, kind: input, shape index: {}]
  %s3 = inlined_call_operand.vmem [shape: f32[1,128], index: 3, kind: input, shape index: {}]
  %s4 = inlined_call_operand.hbm [shape: f32[2,16,16,128], index: 4, kind: output, shape index: {}]
  %s5 = sld [smem:[#allocation0]]
  $region49: #{tpu_custom_call.1} parent=0
    _
  %s7 = ssub.s32 1, %s5
  %s8 = scalar_select 0, %s7, %s5
  $region1: #{tpu_custom_call.1} parent=0
    #allocation3 [shape = 'u8[131072]{0}', space=vmem, size = 0x20000, scoped, tag = 'output window, operand 0']
    #allocation4 [shape = 's32[2]{0}', space=sflag, size = 0x8, scoped, tag = 'scoped memory for tpu_custom_call.1']
    %9 = vsyncpa [#allocation4], 0
    %s10 = scalar_lea.sflag [#allocation4], 1
    %11 = vsyncpa %s10, 0
    loop: start=0, step=1, limit=6
    $region2: #{tpu_custom_call.1} parent=1 // loop_pre_header
      _
    $region3: #{tpu_custom_call.1} parent=1 // loop_header
      %s13 = sphi 0, %s17
      %p14 = scmp.ge.s32.totalorder %s13, 6
      %s20 = sphi 0, %s39
      %s21 = sphi 0, %s35
      %s22 = sphi 0, %s31
      %s23 = sphi 0, %s20
      %s24 = sphi 0, %s21
      %s25 = sphi 0, %s22
      %s26 = sphi 0, %s23
      %s27 = sphi 0, %s24
      %s28 = sphi 0, %s25
      %s44 = sphi 0, %s46
      %s47 = sphi 0, %s44
      %s48 = sphi 0, %s47
      %s64 = sphi 0, %s48
      %s76 = sphi 0, %s78
      %s79 = sphi 0, %s76
      %s80 = sphi 0, %s79
      %s96 = sphi 0, %s80
      %s102 = sphi 0, %s104
      %s105 = sphi 0, %s102
      %s106 = sphi 0, %s105
      %s122 = sphi 0, %s106
      %s128 = sphi 0, %s130
      %s131 = sphi 0, %s128
      %s132 = sphi 0, %s131
      %s148 = sphi 0, %s132
      %s158 = sphi 0, %s160
      %s161 = sphi 0, %s158
      %s162 = sphi 0, %s161
      %s178 = sphi 0, %s162
    $region4: #{tpu_custom_call.1} parent=1 // loop_header_branch
      %16 = sbr.rel (%p14) target = $region8
    $region5: #{tpu_custom_call.1} parent=1 // loop_body
      %s18 = ssub.s32 %s13, 1
      %s19 = ssub.s32 %s13, 2
      %s29 = sadd.s32 1, %s22
      %p30 = scmp.ge.s32.totalorder %s29, 2
      %s31 = scalar_select %p30, 0, %s29
      %s32 = sadd.s32 1, %s21
      %s33 = scalar_select %p30, %s32, %s21
      %p34 = scmp.ge.s32.totalorder %s33, 2
      %s35 = scalar_select %p34, 0, %s33
      %s36 = sadd.s32 1, %s20
      %s37 = scalar_select %p34, %s36, %s20
      %p38 = scmp.ge.s32.totalorder %s37, 1
      %s39 = scalar_select %p38, 0, %s37
      %s40 = ssub.s32 %s21, %s35
      %s41 = ssub.s32 %s22, %s31
      %s42 = sor.u32 %s40, %s41
      %p43 = scmp.eq.s32.totalorder %s42, 0
      %s45 = sadd.s32 %s44, 1
      %s46 = scalar_select %p43, %s44, %s45
      %p49 = pneg %p43
      %p50 = scmp.eq.s32.totalorder %s13, 3
      %p51 = por %p49, %p50
      %p52 = scmp.ne.s32.totalorder %s44, %s47
      %p53 = scmp.eq.s32.totalorder %s13, 0
      %p54 = por %p52, %p53
      %p55 = scmp.ne.s32.totalorder %s44, %s47
      %p56 = scmp.eq.s32.totalorder %s18, 3
      %p57 = por %p55, %p56
      %p58 = scmp.ne.s32.totalorder %s47, %s48
      %p59 = scmp.eq.s32.totalorder %s18, 0
      %p60 = por %p58, %p59
      %p61 = scmp.ne.s32.totalorder %s47, %s48
      %p62 = scmp.eq.s32.totalorder %s19, 3
      %p63 = por %p61, %p62
      %p65 = scmp.ne.s32.totalorder %s48, %s64
      %p66 = scmp.eq.s32.totalorder %s19, 0
      %p67 = por %p65, %p66
      %s68 = sadd.s32 %s22, 1
      %s69 = smul.u32 %s68, 4
      %s70 = sadd.s32 %s31, 1
      %s71 = smul.u32 %s70, 4
      %s72 = ssub.s32 %s21, %s35
      %s73 = ssub.s32 %s69, %s71
      %s74 = sor.u32 %s72, %s73
      %p75 = scmp.eq.s32.totalorder %s74, 0
      %s77 = sadd.s32 %s76, 1
      %s78 = scalar_select %p75, %s76, %s77
      %p81 = pneg %p75
      %p82 = scmp.eq.s32.totalorder %s13, 3
      %p83 = por %p81, %p82
      %p84 = scmp.ne.s32.totalorder %s76, %s79
      %p85 = scmp.eq.s32.totalorder %s13, 0
      %p86 = por %p84, %p85
      %p87 = scmp.ne.s32.totalorder %s76, %s79
      %p88 = scmp.eq.s32.totalorder %s18, 3
      %p89 = por %p87, %p88
      %p90 = scmp.ne.s32.totalorder %s79, %s80
      %p91 = scmp.eq.s32.totalorder %s18, 0
      %p92 = por %p90, %p91
      %p93 = scmp.ne.s32.totalorder %s79, %s80
      %p94 = scmp.eq.s32.totalorder %s19, 3
      %p95 = por %p93, %p94
      %p97 = scmp.ne.s32.totalorder %s80, %s96
      %p98 = scmp.eq.s32.totalorder %s19, 0
      %p99 = por %p97, %p98
      %s100 = ssub.s32 %s20, %s39
      %p101 = scmp.eq.s32.totalorder %s100, 0
      %s103 = sadd.s32 %s102, 1
      %s104 = scalar_select %p101, %s102, %s103
      %p107 = pneg %p101
      %p108 = scmp.eq.s32.totalorder %s13, 3
      %p109 = por %p107, %p108
      %p110 = scmp.ne.s32.totalorder %s102, %s105
      %p111 = scmp.eq.s32.totalorder %s13, 0
      %p112 = por %p110, %p111
      %p113 = scmp.ne.s32.totalorder %s102, %s105
      %p114 = scmp.eq.s32.totalorder %s18, 3
      %p115 = por %p113, %p114
      %p116 = scmp.ne.s32.totalorder %s105, %s106
      %p117 = scmp.eq.s32.totalorder %s18, 0
      %p118 = por %p116, %p117
      %p119 = scmp.ne.s32.totalorder %s105, %s106
      %p120 = scmp.eq.s32.totalorder %s19, 3
      %p121 = por %p119, %p120
      %p123 = scmp.ne.s32.totalorder %s106, %s122
      %p124 = scmp.eq.s32.totalorder %s19, 0
      %p125 = por %p123, %p124
      %s126 = ssub.s32 %s20, %s39
      %p127 = scmp.eq.s32.totalorder %s126, 0
      %s129 = sadd.s32 %s128, 1
      %s130 = scalar_select %p127, %s128, %s129
      %p133 = pneg %p127
      %p134 = scmp.eq.s32.totalorder %s13, 3
      %p135 = por %p133, %p134
      %p136 = scmp.ne.s32.totalorder %s128, %s131
      %p137 = scmp.eq.s32.totalorder %s13, 0
      %p138 = por %p136, %p137
      %p139 = scmp.ne.s32.totalorder %s128, %s131
      %p140 = scmp.eq.s32.totalorder %s18, 3
      %p141 = por %p139, %p140
      %p142 = scmp.ne.s32.totalorder %s131, %s132
      %p143 = scmp.eq.s32.totalorder %s18, 0
      %p144 = por %p142, %p143
      %p145 = scmp.ne.s32.totalorder %s131, %s132
      %p146 = scmp.eq.s32.totalorder %s19, 3
      %p147 = por %p145, %p146
      %p149 = scmp.ne.s32.totalorder %s132, %s148
      %p150 = scmp.eq.s32.totalorder %s19, 0
      %p151 = por %p149, %p150
      %s152 = ssub.s32 %s21, %s35
      %s153 = ssub.s32 %s22, %s31
      %s154 = sor.u32 %s152, %s153
      %s155 = ssub.s32 %s20, %s39
      %s156 = sor.u32 %s154, %s155
      %p157 = scmp.eq.s32.totalorder %s156, 0
      %s159 = sadd.s32 %s158, 1
      %s160 = scalar_select %p157, %s158, %s159
      %p163 = pneg %p157
      %p164 = scmp.eq.s32.totalorder %s13, 3
      %p165 = por %p163, %p164
      %p166 = scmp.ne.s32.totalorder %s158, %s161
      %p167 = scmp.eq.s32.totalorder %s13, 0
      %p168 = por %p166, %p167
      %p169 = scmp.ne.s32.totalorder %s158, %s161
      %p170 = scmp.eq.s32.totalorder %s18, 3
      %p171 = por %p169, %p170
      %p172 = scmp.ne.s32.totalorder %s161, %s162
      %p173 = scmp.eq.s32.totalorder %s18, 0
      %p174 = por %p172, %p173
      %p175 = scmp.ne.s32.totalorder %s161, %s162
      %p176 = scmp.eq.s32.totalorder %s19, 3
      %p177 = por %p175, %p176
      %p179 = scmp.ne.s32.totalorder %s162, %s178
      %p180 = scmp.eq.s32.totalorder %s19, 0
      %p181 = por %p179, %p180
      %p182 = scmp.le.s32.totalorder 1, %s13
      %p183 = scmp.lt.s32.totalorder %s13, 5
      %p184 = pnand %p182, %p183
      %p185 = pneg %p184
      // Predicated region
      $region9: #{tpu_custom_call.1} parent=5 // pred_check
        _
      $region10: #{tpu_custom_call.1} parent=5 // pred_check_branch
        %187 = sbr.rel (%p184) target = $region12
      $region11: #{tpu_custom_call.1} parent=5 // pred_region
        %s188 = ssub.s32 %s13, 1
        // Predicated region
        $region13: #{tpu_custom_call.1} parent=11 // pred_check
          %p189 = pneg %p118
        $region14: #{tpu_custom_call.1} parent=11 // pred_check_branch
          %191 = sbr.rel (%p189) target = $region16
        $region15: #{tpu_custom_call.1} parent=11 // pred_region
          %p192 = scmp.lt.s32.totalorder %s23, 0
          %s193 = scalar_select %p192, %s23, 0
          %s194 = smul.addr %s193, 4
          %s195 = scalar_lea.vmem %s2, %s194
        $region16: #{tpu_custom_call.1} parent=11 // pred_fallthru
          _
        // Predicated region
        $region17: #{tpu_custom_call.1} parent=11 // pred_check
          %p196 = pneg %p144
        $region18: #{tpu_custom_call.1} parent=11 // pred_check_branch
          %198 = sbr.rel (%p196) target = $region20
        $region19: #{tpu_custom_call.1} parent=11 // pred_region
          %p199 = scmp.lt.s32.totalorder %s23, 0
          %s200 = scalar_select %p199, %s23, 0
          %s201 = scalar_lea.vmem %s3, %s200
        $region20: #{tpu_custom_call.1} parent=11 // pred_fallthru
          _
      $region12: #{tpu_custom_call.1} parent=5 // pred_fallthru
        _
      %p202 = scmp.lt.s32.totalorder %s13, 4
      // Predicated region
      $region21: #{tpu_custom_call.1} parent=5 // pred_check
        %p203 = pneg %p202
      $region22: #{tpu_custom_call.1} parent=5 // pred_check_branch
        %205 = sbr.rel (%p203) target = $region24
      $region23: #{tpu_custom_call.1} parent=5 // pred_region
        // Predicated region
        $region25: #{tpu_custom_call.1} parent=23 // pred_check
          %p206 = pneg %p54
        $region26: #{tpu_custom_call.1} parent=23 // pred_check_branch
          %208 = sbr.rel (%p206) target = $region28
        $region27: #{tpu_custom_call.1} parent=23 // pred_region
          %s209 = smul.u32 8, %s22
          %s210 = ssub.s32 18, %s209
          %p211 = scmp.lt.s32.totalorder %s210, 8
          %s212 = scalar_select %p211, %s210, 8
          %s213 = smul.u32 64, %s212
          %s214 = smul.u32 %s213, 3
          %p215 = scmp.lt.s32.totalorder %s21, 1
          %s216 = scalar_select %p215, %s21, 1
          %p217 = scmp.lt.s32.totalorder %s209, 17
          %s218 = scalar_select %p217, %s209, 17
          %s219 = smul.addr %s218, 3
          %s220 = smul.addr %s216, 54
          %s221 = sadd.s32 %s219, %s220
          %s222 = smul.addr %s221, 4
          %s223 = scalar_lea.vmem %s0, %s222
          %s224 = smul.u32 8, %s22
          %s225 = ssub.s32 18, %s224
          %p226 = scmp.lt.s32.totalorder %s225, 8
          %s227 = scalar_select %p226, %s225, 8
          %s228 = smul.u32 64, %s227
          %s229 = smul.u32 %s228, 3
        $region28: #{tpu_custom_call.1} parent=23 // pred_fallthru
          _
        // Predicated region
        $region29: #{tpu_custom_call.1} parent=23 // pred_check
          %p230 = pneg %p86
        $region30: #{tpu_custom_call.1} parent=23 // pred_check_branch
          %232 = sbr.rel (%p230) target = $region32
        $region31: #{tpu_custom_call.1} parent=23 // pred_region
          %s233 = sadd.s32 %s22, 1
          %s234 = smul.u32 %s233, 4
          %s235 = smul.u32 2, %s234
          %p236 = scmp.lt.s32.totalorder %s21, 1
          %s237 = scalar_select %p236, %s21, 1
          %p238 = scmp.lt.s32.totalorder %s235, 17
          %s239 = scalar_select %p238, %s235, 17
          %s240 = smul.addr %s239, 3
          %s241 = smul.addr %s237, 54
          %s242 = sadd.s32 %s240, %s241
          %s243 = smul.addr %s242, 4
          %s244 = scalar_lea.vmem %s1, %s243
          %s245 = sadd.s32 %s22, 1
          %s246 = smul.u32 %s245, 4
          %s247 = smul.u32 2, %s246
        $region32: #{tpu_custom_call.1} parent=23 // pred_fallthru
          _
      $region24: #{tpu_custom_call.1} parent=5 // pred_fallthru
        _
      %p248 = scmp.le.s32.totalorder 1, %s13
      %p249 = scmp.lt.s32.totalorder %s13, 5
      %p250 = pnand %p248, %p249
      %p251 = pneg %p250
      // Predicated region
      $region33: #{tpu_custom_call.1} parent=5 // pred_check
        _
      $region34: #{tpu_custom_call.1} parent=5 // pred_check_branch
        %253 = sbr.rel (%p250) target = $region36
      $region35: #{tpu_custom_call.1} parent=5 // pred_region
        %s254 = ssub.s32 %s13, 1
        %s255 = smul.u32 8, %s25
        %s256 = ssub.s32 18, %s255
        %p257 = scmp.lt.s32.totalorder %s256, 8
        %s258 = scalar_select %p257, %s256, 8
        %s259 = smul.u32 64, %s258
        %s260 = smul.u32 %s259, 3
        %p261 = scmp.lt.s32.totalorder %s24, 1
        %s262 = scalar_select %p261, %s24, 1
        %p263 = scmp.lt.s32.totalorder %s255, 17
        %s264 = scalar_select %p263, %s255, 17
        %s265 = smul.addr %s264, 3
        %s266 = smul.addr %s262, 54
        %s267 = sadd.s32 %s265, %s266
        %s268 = smul.addr %s267, 4
        %s269 = scalar_lea.vmem %s0, %s268
        %p270 = pneg %p60
        %p271 = pneg %p57
        %s272 = sadd.s32 %s25, 1
        %s273 = smul.u32 %s272, 4
        %s274 = smul.u32 2, %s273
        %p275 = scmp.lt.s32.totalorder %s24, 1
        %s276 = scalar_select %p275, %s24, 1
        %p277 = scmp.lt.s32.totalorder %s274, 17
        %s278 = scalar_select %p277, %s274, 17
        %s279 = smul.addr %s278, 3
        %s280 = smul.addr %s276, 54
        %s281 = sadd.s32 %s279, %s280
        %s282 = smul.addr %s281, 4
        %s283 = scalar_lea.vmem %s1, %s282
        %p284 = pneg %p92
        %p285 = pneg %p89
        %p286 = scmp.lt.s32.totalorder %s23, 0
        %s287 = scalar_select %p286, %s23, 0
        %s288 = smul.addr %s287, 4
        %s289 = scalar_lea.vmem %s2, %s288
        %p290 = pneg %p118
        %p291 = pneg %p115
        %p292 = scmp.lt.s32.totalorder %s23, 0
        %s293 = scalar_select %p292, %s23, 0
        %s294 = scalar_lea.vmem %s3, %s293
        %p295 = pneg %p144
        %p296 = pneg %p141
        %p297 = pneg %p174
        %p298 = pneg %p171
        %s299 = sand.u32 %s161, 1
        %s300 = scalar_lea.sflag [#allocation4], %s299
        %s301 = sand.u32 %s161, 1
        %s302 = smul.addr %s301, 128
        %s303 = scalar_lea.vmem [#allocation3], %s302
        %s304 = smul.u32 8, %s25
        %s305 = ssub.s32 18, %s304
        %p306 = scmp.lt.s32.totalorder %s305, 8
        %s307 = scalar_select %p306, %s305, 8
        %s308 = smul.u32 64, %s307
        %s309 = smul.u32 %s308, 3
        %p310 = scmp.lt.s32.totalorder %s24, 1
        %s311 = scalar_select %p310, %s24, 1
        %p312 = scmp.lt.s32.totalorder %s304, 17
        %s313 = scalar_select %p312, %s304, 17
        %s314 = smul.addr %s313, 3
        %s315 = smul.addr %s311, 54
        %s316 = sadd.s32 %s314, %s315
        %s317 = smul.addr %s316, 4
        %s318 = scalar_lea.vmem %s0, %s317
        %s319 = smul.u32 8, %s25
        %s320 = ssub.s32 18, %s319
        %p321 = scmp.lt.s32.totalorder %s320, 8
        %s322 = scalar_select %p321, %s320, 8
        %s323 = smul.u32 64, %s322
        %s324 = smul.u32 %s323, 3
        %s325 = sadd.s32 %s25, 1
        %s326 = smul.u32 %s325, 4
        %s327 = smul.u32 2, %s326
        %p328 = scmp.lt.s32.totalorder %s24, 1
        %s329 = scalar_select %p328, %s24, 1
        %p330 = scmp.lt.s32.totalorder %s327, 17
        %s331 = scalar_select %p330, %s327, 17
        %s332 = smul.addr %s331, 3
        %s333 = smul.addr %s329, 54
        %s334 = sadd.s32 %s332, %s333
        %s335 = smul.addr %s334, 4
        %s336 = scalar_lea.vmem %s1, %s335
        %s337 = sadd.s32 %s25, 1
        %s338 = smul.u32 %s337, 4
        %s339 = smul.u32 2, %s338
        %p340 = scmp.lt.s32.totalorder %s23, 0
        %s341 = scalar_select %p340, %s23, 0
        %s342 = smul.addr %s341, 4
        %s343 = scalar_lea.vmem %s2, %s342
        %p344 = scmp.lt.s32.totalorder %s23, 0
        %s345 = scalar_select %p344, %s23, 0
        %s346 = scalar_lea.vmem %s3, %s345
        %s347 = smul.u32 8, %s25
        %v349 = vld [vmem:[%s318] sm:$0xf]
        %v350 = vld [vmem:[%s318 + $0x4] sm:$0xf]
        %v351 = vld [vmem:[%s318 + $0xc] sm:$0xf]
        %v352 = vld [vmem:[%s318 + $0x10] sm:$0xf]
        %v353 = vld [vmem:[%s318 + $0x18] sm:$0xf]
        %v354 = vld [vmem:[%s318 + $0x1c] sm:$0xf]
        %v355 = vld [vmem:[%s318 + $0x24] sm:$0xf]
        %v356 = vld [vmem:[%s318 + $0x28] sm:$0xf]
        %v357 = vld [vmem:[%s318 + $0x30] sm:$0xf]
        %v358 = vld [vmem:[%s318 + $0x34] sm:$0xf]
        %v359 = vld [vmem:[%s318 + $0x3c] sm:$0xf]
        %v360 = vld [vmem:[%s318 + $0x40] sm:$0xf]
        %v361 = vld [vmem:[%s318 + $0x48] sm:$0xf]
        %v362 = vld [vmem:[%s318 + $0x4c] sm:$0xf]
        %v363 = vld [vmem:[%s318 + $0x54] sm:$0xf]
        %v364 = vld [vmem:[%s318 + $0x58] sm:$0xf]
        %v381 = vunpack.c.l.b16 %v349
        %v382 = vunpack.c.l.b16 %v350
        %v383 = vunpack.c.l.b16 %v351
        %v384 = vunpack.c.l.b16 %v352
        %v385 = vunpack.c.l.b16 %v353
        %v386 = vunpack.c.l.b16 %v354
        %v387 = vunpack.c.l.b16 %v355
        %v388 = vunpack.c.l.b16 %v356
        %v389 = vunpack.c.l.b16 %v357
        %v390 = vunpack.c.l.b16 %v358
        %v391 = vunpack.c.l.b16 %v359
        %v392 = vunpack.c.l.b16 %v360
        %v393 = vunpack.c.l.b16 %v361
        %v394 = vunpack.c.l.b16 %v362
        %v395 = vunpack.c.l.b16 %v363
        %v396 = vunpack.c.l.b16 %v364
        %v397 = vpack.c.b16 %v382, %v381
        %v398 = vpack.c.b16 %v384, %v383
        %v399 = vpack.c.b16 %v386, %v385
        %v400 = vpack.c.b16 %v388, %v387
        %v401 = vpack.c.b16 %v390, %v389
        %v402 = vpack.c.b16 %v392, %v391
        %v403 = vpack.c.b16 %v394, %v393
        %v404 = vpack.c.b16 %v396, %v395
        %413 = vst [vmem:[#allocation2] sm:$0xff] %v397
        %414 = vst [vmem:[#allocation2 + $0x48] sm:$0xff] %v398
        %415 = vst [vmem:[#allocation2 + $0x90] sm:$0xff] %v399
        %416 = vst [vmem:[#allocation2 + $0xd8] sm:$0xff] %v400
        %417 = vst [vmem:[#allocation2 + $0x120] sm:$0xff] %v401
        %418 = vst [vmem:[#allocation2 + $0x168] sm:$0xff] %v402
        %419 = vst [vmem:[#allocation2 + $0x1b0] sm:$0xff] %v403
        %420 = vst [vmem:[#allocation2 + $0x1f8] sm:$0xff] %v404
        %v421 = vld [vmem:[%s318] sm:$0xf]
        %v422 = vld [vmem:[%s318 + $0x4] sm:$0xf]
        %v423 = vld [vmem:[%s318 + $0x8] sm:$0x1]
        %v424 = vld [vmem:[%s318 + $0xc] sm:$0xf]
        %v425 = vld [vmem:[%s318 + $0x10] sm:$0xf]
        %v426 = vld [vmem:[%s318 + $0x14] sm:$0x1]
        %v427 = vld [vmem:[%s318 + $0x18] sm:$0xf]
        %v428 = vld [vmem:[%s318 + $0x1c] sm:$0xf]
        %v429 = vld [vmem:[%s318 + $0x20] sm:$0x1]
        %v430 = vld [vmem:[%s318 + $0x24] sm:$0xf]
        %v431 = vld [vmem:[%s318 + $0x28] sm:$0xf]
        %v432 = vld [vmem:[%s318 + $0x2c] sm:$0x1]
        %v433 = vld [vmem:[%s318 + $0x30] sm:$0xf]
        %v434 = vld [vmem:[%s318 + $0x34] sm:$0xf]
        %v435 = vld [vmem:[%s318 + $0x38] sm:$0x1]
        %v436 = vld [vmem:[%s318 + $0x3c] sm:$0xf]
        %v437 = vld [vmem:[%s318 + $0x40] sm:$0xf]
        %v438 = vld [vmem:[%s318 + $0x44] sm:$0x1]
        %v439 = vld [vmem:[%s318 + $0x48] sm:$0xf]
        %v440 = vld [vmem:[%s318 + $0x4c] sm:$0xf]
        %v441 = vld [vmem:[%s318 + $0x50] sm:$0x1]
        %v442 = vld [vmem:[%s318 + $0x54] sm:$0xf]
        %v443 = vld [vmem:[%s318 + $0x58] sm:$0xf]
        %v444 = vld [vmem:[%s318 + $0x5c] sm:$0x1]
        %v469 = vunpack.c.l.b16 %v421
        %v470 = vunpack.c.l.b16 %v422
        %v471 = vunpack.c.l.b16 %v423
        %v472 = vunpack.c.l.b16 %v424
        %v473 = vunpack.c.l.b16 %v425
        %v474 = vunpack.c.l.b16 %v426
        %v475 = vunpack.c.l.b16 %v427
        %v476 = vunpack.c.l.b16 %v428
        %v477 = vunpack.c.l.b16 %v429
        %v478 = vunpack.c.l.b16 %v430
        %v479 = vunpack.c.l.b16 %v431
        %v480 = vunpack.c.l.b16 %v432
        %v481 = vunpack.c.l.b16 %v433
        %v482 = vunpack.c.l.b16 %v434
        %v483 = vunpack.c.l.b16 %v435
        %v484 = vunpack.c.l.b16 %v436
        %v485 = vunpack.c.l.b16 %v437
        %v486 = vunpack.c.l.b16 %v438
        %v487 = vunpack.c.l.b16 %v439
        %v488 = vunpack.c.l.b16 %v440
        %v489 = vunpack.c.l.b16 %v441
        %v490 = vunpack.c.l.b16 %v442
        %v491 = vunpack.c.l.b16 %v443
        %v492 = vunpack.c.l.b16 %v444
        %v493 = vpack.c.b16 %v470, %v469
        %v494 = vpack.c.b16 %v471, %v471
        %v495 = vpack.c.b16 %v473, %v472
        %v496 = vpack.c.b16 %v474, %v474
        %v497 = vpack.c.b16 %v476, %v475
        %v498 = vpack.c.b16 %v477, %v477
        %v499 = vpack.c.b16 %v479, %v478
        %v500 = vpack.c.b16 %v480, %v480
        %v501 = vpack.c.b16 %v482, %v481
        %v502 = vpack.c.b16 %v483, %v483
        %v503 = vpack.c.b16 %v485, %v484
        %v504 = vpack.c.b16 %v486, %v486
        %v505 = vpack.c.b16 %v488, %v487
        %v506 = vpack.c.b16 %v489, %v489
        %v507 = vpack.c.b16 %v491, %v490
        %v508 = vpack.c.b16 %v492, %v492
        %vm509 = vsmask.f32 7424
        %v511 = vshrl.u32 %v493, 16
        %v513 = vshll.u32 %v493, 16
        %v515 = vrot.slane %v513, 1
        %v516 = vor.u32 %v511, %v515
        %v518 = vshll.u32 %v494, 16
        %v520 = vrot.slane %v518, 1
        %v521 = vsel %vm509, %v516, %v520
        %v523 = vshrl.u32 %v495, 16
        %v525 = vshll.u32 %v495, 16
        %v527 = vrot.slane %v525, 1
        %v528 = vor.u32 %v523, %v527
        %v530 = vshll.u32 %v496, 16
        %v532 = vrot.slane %v530, 1
        %v533 = vsel %vm509, %v528, %v532
        %v535 = vshrl.u32 %v497, 16
        %v537 = vshll.u32 %v497, 16
        %v539 = vrot.slane %v537, 1
        %v540 = vor.u32 %v535, %v539
        %v542 = vshll.u32 %v498, 16
        %v544 = vrot.slane %v542, 1
        %v545 = vsel %vm509, %v540, %v544
        %v547 = vshrl.u32 %v499, 16
        %v549 = vshll.u32 %v499, 16
        %v551 = vrot.slane %v549, 1
        %v552 = vor.u32 %v547, %v551
        %v554 = vshll.u32 %v500, 16
        %v556 = vrot.slane %v554, 1
        %v557 = vsel %vm509, %v552, %v556
        %v559 = vshrl.u32 %v501, 16
        %v561 = vshll.u32 %v501, 16
        %v563 = vrot.slane %v561, 1
        %v564 = vor.u32 %v559, %v563
        %v566 = vshll.u32 %v502, 16
        %v568 = vrot.slane %v566, 1
        %v569 = vsel %vm509, %v564, %v568
        %v571 = vshrl.u32 %v503, 16
        %v573 = vshll.u32 %v503, 16
        %v575 = vrot.slane %v573, 1
        %v576 = vor.u32 %v571, %v575
        %v578 = vshll.u32 %v504, 16
        %v580 = vrot.slane %v578, 1
        %v581 = vsel %vm509, %v576, %v580
        %v583 = vshrl.u32 %v505, 16
        %v585 = vshll.u32 %v505, 16
        %v587 = vrot.slane %v585, 1
        %v588 = vor.u32 %v583, %v587
        %v590 = vshll.u32 %v506, 16
        %v592 = vrot.slane %v590, 1
        %v593 = vsel %vm509, %v588, %v592
        %v595 = vshrl.u32 %v507, 16
        %v597 = vshll.u32 %v507, 16
        %v599 = vrot.slane %v597, 1
        %v600 = vor.u32 %v595, %v599
        %v602 = vshll.u32 %v508, 16
        %v604 = vrot.slane %v602, 1
        %v605 = vsel %vm509, %v600, %v604
        %614 = vst [vmem:[#allocation2 + $0x8] sm:$0xff] %v521
        %615 = vst [vmem:[#allocation2 + $0x50] sm:$0xff] %v533
        %616 = vst [vmem:[#allocation2 + $0x98] sm:$0xff] %v545
        %617 = vst [vmem:[#allocation2 + $0xe0] sm:$0xff] %v557
        %618 = vst [vmem:[#allocation2 + $0x128] sm:$0xff] %v569
        %619 = vst [vmem:[#allocation2 + $0x170] sm:$0xff] %v581
        %620 = vst [vmem:[#allocation2 + $0x1b8] sm:$0xff] %v593
        %621 = vst [vmem:[#allocation2 + $0x200] sm:$0xff] %v605
        %v622 = vld [vmem:[%s318] sm:$0xe]
        %v623 = vld [vmem:[%s318 + $0x4] sm:$0xf]
        %v624 = vld [vmem:[%s318 + $0x8] sm:$0x1]
        %v625 = vld [vmem:[%s318 + $0xc] sm:$0xe]
        %v626 = vld [vmem:[%s318 + $0x10] sm:$0xf]
        %v627 = vld [vmem:[%s318 + $0x14] sm:$0x1]
        %v628 = vld [vmem:[%s318 + $0x18] sm:$0xe]
        %v629 = vld [vmem:[%s318 + $0x1c] sm:$0xf]
        %v630 = vld [vmem:[%s318 + $0x20] sm:$0x1]
        %v631 = vld [vmem:[%s318 + $0x24] sm:$0xe]
        %v632 = vld [vmem:[%s318 + $0x28] sm:$0xf]
        %v633 = vld [vmem:[%s318 + $0x2c] sm:$0x1]
        %v634 = vld [vmem:[%s318 + $0x30] sm:$0xe]
        %v635 = vld [vmem:[%s318 + $0x34] sm:$0xf]
        %v636 = vld [vmem:[%s318 + $0x38] sm:$0x1]
        %v637 = vld [vmem:[%s318 + $0x3c] sm:$0xe]
        %v638 = vld [vmem:[%s318 + $0x40] sm:$0xf]
        %v639 = vld [vmem:[%s318 + $0x44] sm:$0x1]
        %v640 = vld [vmem:[%s318 + $0x48] sm:$0xe]
        %v641 = vld [vmem:[%s318 + $0x4c] sm:$0xf]
        %v642 = vld [vmem:[%s318 + $0x50] sm:$0x1]
        %v643 = vld [vmem:[%s318 + $0x54] sm:$0xe]
        %v644 = vld [vmem:[%s318 + $0x58] sm:$0xf]
        %v645 = vld [vmem:[%s318 + $0x5c] sm:$0x1]
        %v670 = vunpack.c.l.b16 %v622
        %v671 = vunpack.c.l.b16 %v623
        %v672 = vunpack.c.l.b16 %v624
        %v673 = vunpack.c.l.b16 %v625
        %v674 = vunpack.c.l.b16 %v626
        %v675 = vunpack.c.l.b16 %v627
        %v676 = vunpack.c.l.b16 %v628
        %v677 = vunpack.c.l.b16 %v629
        %v678 = vunpack.c.l.b16 %v630
        %v679 = vunpack.c.l.b16 %v631
        %v680 = vunpack.c.l.b16 %v632
        %v681 = vunpack.c.l.b16 %v633
        %v682 = vunpack.c.l.b16 %v634
        %v683 = vunpack.c.l.b16 %v635
        %v684 = vunpack.c.l.b16 %v636
        %v685 = vunpack.c.l.b16 %v637
        %v686 = vunpack.c.l.b16 %v638
        %v687 = vunpack.c.l.b16 %v639
        %v688 = vunpack.c.l.b16 %v640
        %v689 = vunpack.c.l.b16 %v641
        %v690 = vunpack.c.l.b16 %v642
        %v691 = vunpack.c.l.b16 %v643
        %v692 = vunpack.c.l.b16 %v644
        %v693 = vunpack.c.l.b16 %v645
        %v694 = vpack.c.b16 %v671, %v670
        %v695 = vpack.c.b16 %v672, %v672
        %v696 = vpack.c.b16 %v674, %v673
        %v697 = vpack.c.b16 %v675, %v675
        %v698 = vpack.c.b16 %v677, %v676
        %v699 = vpack.c.b16 %v678, %v678
        %v700 = vpack.c.b16 %v680, %v679
        %v701 = vpack.c.b16 %v681, %v681
        %v702 = vpack.c.b16 %v683, %v682
        %v703 = vpack.c.b16 %v684, %v684
        %v704 = vpack.c.b16 %v686, %v685
        %v705 = vpack.c.b16 %v687, %v687
        %v706 = vpack.c.b16 %v689, %v688
        %v707 = vpack.c.b16 %v690, %v690
        %v708 = vpack.c.b16 %v692, %v691
        %v709 = vpack.c.b16 %v693, %v693
        %vm710 = vcmask 1046528
        %v711 = vrot.slane %v694, 1
        %v712 = vrot.slane %v695, 1
        %v713 = vsel %vm710, %v711, %v712
        %v714 = vrot.slane %v696, 1
        %v715 = vrot.slane %v697, 1
        %v716 = vsel %vm710, %v714, %v715
        %v717 = vrot.slane %v698, 1
        %v718 = vrot.slane %v699, 1
        %v719 = vsel %vm710, %v717, %v718
        %v720 = vrot.slane %v700, 1
        %v721 = vrot.slane %v701, 1
        %v722 = vsel %vm710, %v720, %v721
        %v723 = vrot.slane %v702, 1
        %v724 = vrot.slane %v703, 1
        %v725 = vsel %vm710, %v723, %v724
        %v726 = vrot.slane %v704, 1
        %v727 = vrot.slane %v705, 1
        %v728 = vsel %vm710, %v726, %v727
        %v729 = vrot.slane %v706, 1
        %v730 = vrot.slane %v707, 1
        %v731 = vsel %vm710, %v729, %v730
        %v732 = vrot.slane %v708, 1
        %v733 = vrot.slane %v709, 1
        %v734 = vsel %vm710, %v732, %v733
        %743 = vst [vmem:[#allocation2 + $0x10] sm:$0xff] %v713
        %744 = vst [vmem:[#allocation2 + $0x58] sm:$0xff] %v716
        %745 = vst [vmem:[#allocation2 + $0xa0] sm:$0xff] %v719
        %746 = vst [vmem:[#allocation2 + $0xe8] sm:$0xff] %v722
        %747 = vst [vmem:[#allocation2 + $0x130] sm:$0xff] %v725
        %748 = vst [vmem:[#allocation2 + $0x178] sm:$0xff] %v728
        %749 = vst [vmem:[#allocation2 + $0x1c0] sm:$0xff] %v731
        %750 = vst [vmem:[#allocation2 + $0x208] sm:$0xff] %v734
        %s751 = scalar_lea.vmem %s318, 12
        %v752 = vld [vmem:[%s751] sm:$0xf]
        %v753 = vld [vmem:[%s751 + $0x4] sm:$0xf]
        %v754 = vld [vmem:[%s751 + $0xc] sm:$0xf]
        %v755 = vld [vmem:[%s751 + $0x10] sm:$0xf]
        %v756 = vld [vmem:[%s751 + $0x18] sm:$0xf]
        %v757 = vld [vmem:[%s751 + $0x1c] sm:$0xf]
        %v758 = vld [vmem:[%s751 + $0x24] sm:$0xf]
        %v759 = vld [vmem:[%s751 + $0x28] sm:$0xf]
        %v760 = vld [vmem:[%s751 + $0x30] sm:$0xf]
        %v761 = vld [vmem:[%s751 + $0x34] sm:$0xf]
        %v762 = vld [vmem:[%s751 + $0x3c] sm:$0xf]
        %v763 = vld [vmem:[%s751 + $0x40] sm:$0xf]
        %v764 = vld [vmem:[%s751 + $0x48] sm:$0xf]
        %v765 = vld [vmem:[%s751 + $0x4c] sm:$0xf]
        %v780 = vunpack.c.l.b16 %v752
        %v781 = vunpack.c.l.b16 %v753
        %v782 = vunpack.c.l.b16 %v754
        %v783 = vunpack.c.l.b16 %v755
        %v784 = vunpack.c.l.b16 %v756
        %v785 = vunpack.c.l.b16 %v757
        %v786 = vunpack.c.l.b16 %v758
        %v787 = vunpack.c.l.b16 %v759
        %v788 = vunpack.c.l.b16 %v760
        %v789 = vunpack.c.l.b16 %v761
        %v790 = vunpack.c.l.b16 %v762
        %v791 = vunpack.c.l.b16 %v763
        %v792 = vunpack.c.l.b16 %v764
        %v793 = vunpack.c.l.b16 %v765
        %v794 = vpack.c.b16 %v781, %v780
        %v795 = vpack.c.b16 %v783, %v782
        %v796 = vpack.c.b16 %v785, %v784
        %v797 = vpack.c.b16 %v787, %v786
        %v798 = vpack.c.b16 %v789, %v788
        %v799 = vpack.c.b16 %v791, %v790
        %v800 = vpack.c.b16 %v793, %v792
        %808 = vst [vmem:[#allocation2 + $0x18] sm:$0xff] %v794
        %809 = vst [vmem:[#allocation2 + $0x60] sm:$0xff] %v795
        %810 = vst [vmem:[#allocation2 + $0xa8] sm:$0xff] %v796
        %811 = vst [vmem:[#allocation2 + $0xf0] sm:$0xff] %v797
        %812 = vst [vmem:[#allocation2 + $0x138] sm:$0xff] %v798
        %813 = vst [vmem:[#allocation2 + $0x180] sm:$0xff] %v799
        %814 = vst [vmem:[#allocation2 + $0x1c8] sm:$0xff] %v800
        %v815 = vld [vmem:[%s336] sm:$0xf]
        %v816 = vld [vmem:[%s336 + $0x4] sm:$0xf]
        %v819 = vunpack.c.l.b16 %v815
        %v820 = vunpack.c.l.b16 %v816
        %v821 = vpack.c.b16 %v820, %v819
        %s823 = scalar_lea.vmem [#allocation2], 504
        %824 = vst [vmem:[%s823 + $0x18] sm:$0xff] %v821
        %v825 = vld [vmem:[%s751] sm:$0xf]
        %v826 = vld [vmem:[%s751 + $0x4] sm:$0xf]
        %v827 = vld [vmem:[%s751 + $0x8] sm:$0x1]
        %v828 = vld [vmem:[%s751 + $0xc] sm:$0xf]
        %v829 = vld [vmem:[%s751 + $0x10] sm:$0xf]
        %v830 = vld [vmem:[%s751 + $0x14] sm:$0x1]
        %v831 = vld [vmem:[%s751 + $0x18] sm:$0xf]
        %v832 = vld [vmem:[%s751 + $0x1c] sm:$0xf]
        %v833 = vld [vmem:[%s751 + $0x20] sm:$0x1]
        %v834 = vld [vmem:[%s751 + $0x24] sm:$0xf]
        %v835 = vld [vmem:[%s751 + $0x28] sm:$0xf]
        %v836 = vld [vmem:[%s751 + $0x2c] sm:$0x1]
        %v837 = vld [vmem:[%s751 + $0x30] sm:$0xf]
        %v838 = vld [vmem:[%s751 + $0x34] sm:$0xf]
        %v839 = vld [vmem:[%s751 + $0x38] sm:$0x1]
        %v840 = vld [vmem:[%s751 + $0x3c] sm:$0xf]
        %v841 = vld [vmem:[%s751 + $0x40] sm:$0xf]
        %v842 = vld [vmem:[%s751 + $0x44] sm:$0x1]
        %v843 = vld [vmem:[%s751 + $0x48] sm:$0xf]
        %v844 = vld [vmem:[%s751 + $0x4c] sm:$0xf]
        %v845 = vld [vmem:[%s751 + $0x50] sm:$0x1]
        %v867 = vunpack.c.l.b16 %v825
        %v868 = vunpack.c.l.b16 %v826
        %v869 = vunpack.c.l.b16 %v827
        %v870 = vunpack.c.l.b16 %v828
        %v871 = vunpack.c.l.b16 %v829
        %v872 = vunpack.c.l.b16 %v830
        %v873 = vunpack.c.l.b16 %v831
        %v874 = vunpack.c.l.b16 %v832
        %v875 = vunpack.c.l.b16 %v833
        %v876 = vunpack.c.l.b16 %v834
        %v877 = vunpack.c.l.b16 %v835
        %v878 = vunpack.c.l.b16 %v836
        %v879 = vunpack.c.l.b16 %v837
        %v880 = vunpack.c.l.b16 %v838
        %v881 = vunpack.c.l.b16 %v839
        %v882 = vunpack.c.l.b16 %v840
        %v883 = vunpack.c.l.b16 %v841
        %v884 = vunpack.c.l.b16 %v842
        %v885 = vunpack.c.l.b16 %v843
        %v886 = vunpack.c.l.b16 %v844
        %v887 = vunpack.c.l.b16 %v845
        %v888 = vpack.c.b16 %v868, %v867
        %v889 = vpack.c.b16 %v869, %v869
        %v890 = vpack.c.b16 %v871, %v870
        %v891 = vpack.c.b16 %v872, %v872
        %v892 = vpack.c.b16 %v874, %v873
        %v893 = vpack.c.b16 %v875, %v875
        %v894 = vpack.c.b16 %v877, %v876
        %v895 = vpack.c.b16 %v878, %v878
        %v896 = vpack.c.b16 %v880, %v879
        %v897 = vpack.c.b16 %v881, %v881
        %v898 = vpack.c.b16 %v883, %v882
        %v899 = vpack.c.b16 %v884, %v884
        %v900 = vpack.c.b16 %v886, %v885
        %v901 = vpack.c.b16 %v887, %v887
        %v903 = vshrl.u32 %v888, 16
        %v905 = vshll.u32 %v888, 16
        %v907 = vrot.slane %v905, 1
        %v908 = vor.u32 %v903, %v907
        %v910 = vshll.u32 %v889, 16
        %v912 = vrot.slane %v910, 1
        %v913 = vsel %vm509, %v908, %v912
        %v915 = vshrl.u32 %v890, 16
        %v917 = vshll.u32 %v890, 16
        %v919 = vrot.slane %v917, 1
        %v920 = vor.u32 %v915, %v919
        %v922 = vshll.u32 %v891, 16
        %v924 = vrot.slane %v922, 1
        %v925 = vsel %vm509, %v920, %v924
        %v927 = vshrl.u32 %v892, 16
        %v929 = vshll.u32 %v892, 16
        %v931 = vrot.slane %v929, 1
        %v932 = vor.u32 %v927, %v931
        %v934 = vshll.u32 %v893, 16
        %v936 = vrot.slane %v934, 1
        %v937 = vsel %vm509, %v932, %v936
        %v939 = vshrl.u32 %v894, 16
        %v941 = vshll.u32 %v894, 16
        %v943 = vrot.slane %v941, 1
        %v944 = vor.u32 %v939, %v943
        %v946 = vshll.u32 %v895, 16
        %v948 = vrot.slane %v946, 1
        %v949 = vsel %vm509, %v944, %v948
        %v951 = vshrl.u32 %v896, 16
        %v953 = vshll.u32 %v896, 16
        %v955 = vrot.slane %v953, 1
        %v956 = vor.u32 %v951, %v955
        %v958 = vshll.u32 %v897, 16
        %v960 = vrot.slane %v958, 1
        %v961 = vsel %vm509, %v956, %v960
        %v963 = vshrl.u32 %v898, 16
        %v965 = vshll.u32 %v898, 16
        %v967 = vrot.slane %v965, 1
        %v968 = vor.u32 %v963, %v967
        %v970 = vshll.u32 %v899, 16
        %v972 = vrot.slane %v970, 1
        %v973 = vsel %vm509, %v968, %v972
        %v975 = vshrl.u32 %v900, 16
        %v977 = vshll.u32 %v900, 16
        %v979 = vrot.slane %v977, 1
        %v980 = vor.u32 %v975, %v979
        %v982 = vshll.u32 %v901, 16
        %v984 = vrot.slane %v982, 1
        %v985 = vsel %vm509, %v980, %v984
        %993 = vst [vmem:[#allocation2 + $0x20] sm:$0xff] %v913
        %994 = vst [vmem:[#allocation2 + $0x68] sm:$0xff] %v925
        %995 = vst [vmem:[#allocation2 + $0xb0] sm:$0xff] %v937
        %996 = vst [vmem:[#allocation2 + $0xf8] sm:$0xff] %v949
        %997 = vst [vmem:[#allocation2 + $0x140] sm:$0xff] %v961
        %998 = vst [vmem:[#allocation2 + $0x188] sm:$0xff] %v973
        %999 = vst [vmem:[#allocation2 + $0x1d0] sm:$0xff] %v985
        %v1000 = vld [vmem:[%s336] sm:$0xf]
        %v1001 = vld [vmem:[%s336 + $0x4] sm:$0xf]
        %v1002 = vld [vmem:[%s336 + $0x8] sm:$0x1]
        %v1006 = vunpack.c.l.b16 %v1000
        %v1007 = vunpack.c.l.b16 %v1001
        %v1008 = vunpack.c.l.b16 %v1002
        %v1009 = vpack.c.b16 %v1007, %v1006
        %v1010 = vpack.c.b16 %v1008, %v1008
        %v1012 = vshrl.u32 %v1009, 16
        %v1014 = vshll.u32 %v1009, 16
        %v1016 = vrot.slane %v1014, 1
        %v1017 = vor.u32 %v1012, %v1016
        %v1019 = vshll.u32 %v1010, 16
        %v1021 = vrot.slane %v1019, 1
        %v1022 = vsel %vm509, %v1017, %v1021
        %1024 = vst [vmem:[%s823 + $0x20] sm:$0xff] %v1022
        %v1025 = vld [vmem:[%s751] sm:$0xe]
        %v1026 = vld [vmem:[%s751 + $0x4] sm:$0xf]
        %v1027 = vld [vmem:[%s751 + $0x8] sm:$0x1]
        %v1028 = vld [vmem:[%s751 + $0xc] sm:$0xe]
        %v1029 = vld [vmem:[%s751 + $0x10] sm:$0xf]
        %v1030 = vld [vmem:[%s751 + $0x14] sm:$0x1]
        %v1031 = vld [vmem:[%s751 + $0x18] sm:$0xe]
        %v1032 = vld [vmem:[%s751 + $0x1c] sm:$0xf]
        %v1033 = vld [vmem:[%s751 + $0x20] sm:$0x1]
        %v1034 = vld [vmem:[%s751 + $0x24] sm:$0xe]
        %v1035 = vld [vmem:[%s751 + $0x28] sm:$0xf]
        %v1036 = vld [vmem:[%s751 + $0x2c] sm:$0x1]
        %v1037 = vld [vmem:[%s751 + $0x30] sm:$0xe]
        %v1038 = vld [vmem:[%s751 + $0x34] sm:$0xf]
        %v1039 = vld [vmem:[%s751 + $0x38] sm:$0x1]
        %v1040 = vld [vmem:[%s751 + $0x3c] sm:$0xe]
        %v1041 = vld [vmem:[%s751 + $0x40] sm:$0xf]
        %v1042 = vld [vmem:[%s751 + $0x44] sm:$0x1]
        %v1043 = vld [vmem:[%s751 + $0x48] sm:$0xe]
        %v1044 = vld [vmem:[%s751 + $0x4c] sm:$0xf]
        %v1045 = vld [vmem:[%s751 + $0x50] sm:$0x1]
        %v1067 = vunpack.c.l.b16 %v1025
        %v1068 = vunpack.c.l.b16 %v1026
        %v1069 = vunpack.c.l.b16 %v1027
        %v1070 = vunpack.c.l.b16 %v1028
        %v1071 = vunpack.c.l.b16 %v1029
        %v1072 = vunpack.c.l.b16 %v1030
        %v1073 = vunpack.c.l.b16 %v1031
        %v1074 = vunpack.c.l.b16 %v1032
        %v1075 = vunpack.c.l.b16 %v1033
        %v1076 = vunpack.c.l.b16 %v1034
        %v1077 = vunpack.c.l.b16 %v1035
        %v1078 = vunpack.c.l.b16 %v1036
        %v1079 = vunpack.c.l.b16 %v1037
        %v1080 = vunpack.c.l.b16 %v1038
        %v1081 = vunpack.c.l.b16 %v1039
        %v1082 = vunpack.c.l.b16 %v1040
        %v1083 = vunpack.c.l.b16 %v1041
        %v1084 = vunpack.c.l.b16 %v1042
        %v1085 = vunpack.c.l.b16 %v1043
        %v1086 = vunpack.c.l.b16 %v1044
        %v1087 = vunpack.c.l.b16 %v1045
        %v1088 = vpack.c.b16 %v1068, %v1067
        %v1089 = vpack.c.b16 %v1069, %v1069
        %v1090 = vpack.c.b16 %v1071, %v1070
        %v1091 = vpack.c.b16 %v1072, %v1072
        %v1092 = vpack.c.b16 %v1074, %v1073
        %v1093 = vpack.c.b16 %v1075, %v1075
        %v1094 = vpack.c.b16 %v1077, %v1076
        %v1095 = vpack.c.b16 %v1078, %v1078
        %v1096 = vpack.c.b16 %v1080, %v1079
        %v1097 = vpack.c.b16 %v1081, %v1081
        %v1098 = vpack.c.b16 %v1083, %v1082
        %v1099 = vpack.c.b16 %v1084, %v1084
        %v1100 = vpack.c.b16 %v1086, %v1085
        %v1101 = vpack.c.b16 %v1087, %v1087
        %v1102 = vrot.slane %v1088, 1
        %v1103 = vrot.slane %v1089, 1
        %v1104 = vsel %vm710, %v1102, %v1103
        %v1105 = vrot.slane %v1090, 1
        %v1106 = vrot.slane %v1091, 1
        %v1107 = vsel %vm710, %v1105, %v1106
        %v1108 = vrot.slane %v1092, 1
        %v1109 = vrot.slane %v1093, 1
        %v1110 = vsel %vm710, %v1108, %v1109
        %v1111 = vrot.slane %v1094, 1
        %v1112 = vrot.slane %v1095, 1
        %v1113 = vsel %vm710, %v1111, %v1112
        %v1114 = vrot.slane %v1096, 1
        %v1115 = vrot.slane %v1097, 1
        %v1116 = vsel %vm710, %v1114, %v1115
        %v1117 = vrot.slane %v1098, 1
        %v1118 = vrot.slane %v1099, 1
        %v1119 = vsel %vm710, %v1117, %v1118
        %v1120 = vrot.slane %v1100, 1
        %v1121 = vrot.slane %v1101, 1
        %v1122 = vsel %vm710, %v1120, %v1121
        %1130 = vst [vmem:[#allocation2 + $0x28] sm:$0xff] %v1104
        %1131 = vst [vmem:[#allocation2 + $0x70] sm:$0xff] %v1107
        %1132 = vst [vmem:[#allocation2 + $0xb8] sm:$0xff] %v1110
        %1133 = vst [vmem:[#allocation2 + $0x100] sm:$0xff] %v1113
        %1134 = vst [vmem:[#allocation2 + $0x148] sm:$0xff] %v1116
        %1135 = vst [vmem:[#allocation2 + $0x190] sm:$0xff] %v1119
        %1136 = vst [vmem:[#allocation2 + $0x1d8] sm:$0xff] %v1122
        %v1137 = vld [vmem:[%s336] sm:$0xe]
        %v1138 = vld [vmem:[%s336 + $0x4] sm:$0xf]
        %v1139 = vld [vmem:[%s336 + $0x8] sm:$0x1]
        %v1143 = vunpack.c.l.b16 %v1137
        %v1144 = vunpack.c.l.b16 %v1138
        %v1145 = vunpack.c.l.b16 %v1139
        %v1146 = vpack.c.b16 %v1144, %v1143
        %v1147 = vpack.c.b16 %v1145, %v1145
        %v1148 = vrot.slane %v1146, 1
        %v1149 = vrot.slane %v1147, 1
        %v1150 = vsel %vm710, %v1148, %v1149
        %1152 = vst [vmem:[%s823 + $0x28] sm:$0xff] %v1150
        %s1153 = scalar_lea.vmem %s318, 24
        %v1154 = vld [vmem:[%s1153] sm:$0xf]
        %v1155 = vld [vmem:[%s1153 + $0x4] sm:$0xf]
        %v1156 = vld [vmem:[%s1153 + $0xc] sm:$0xf]
        %v1157 = vld [vmem:[%s1153 + $0x10] sm:$0xf]
        %v1158 = vld [vmem:[%s1153 + $0x18] sm:$0xf]
        %v1159 = vld [vmem:[%s1153 + $0x1c] sm:$0xf]
        %v1160 = vld [vmem:[%s1153 + $0x24] sm:$0xf]
        %v1161 = vld [vmem:[%s1153 + $0x28] sm:$0xf]
        %v1162 = vld [vmem:[%s1153 + $0x30] sm:$0xf]
        %v1163 = vld [vmem:[%s1153 + $0x34] sm:$0xf]
        %v1164 = vld [vmem:[%s1153 + $0x3c] sm:$0xf]
        %v1165 = vld [vmem:[%s1153 + $0x40] sm:$0xf]
        %v1178 = vunpack.c.l.b16 %v1154
        %v1179 = vunpack.c.l.b16 %v1155
        %v1180 = vunpack.c.l.b16 %v1156
        %v1181 = vunpack.c.l.b16 %v1157
        %v1182 = vunpack.c.l.b16 %v1158
        %v1183 = vunpack.c.l.b16 %v1159
        %v1184 = vunpack.c.l.b16 %v1160
        %v1185 = vunpack.c.l.b16 %v1161
        %v1186 = vunpack.c.l.b16 %v1162
        %v1187 = vunpack.c.l.b16 %v1163
        %v1188 = vunpack.c.l.b16 %v1164
        %v1189 = vunpack.c.l.b16 %v1165
        %v1190 = vpack.c.b16 %v1179, %v1178
        %v1191 = vpack.c.b16 %v1181, %v1180
        %v1192 = vpack.c.b16 %v1183, %v1182
        %v1193 = vpack.c.b16 %v1185, %v1184
        %v1194 = vpack.c.b16 %v1187, %v1186
        %v1195 = vpack.c.b16 %v1189, %v1188
        %1202 = vst [vmem:[#allocation2 + $0x30] sm:$0xff] %v1190
        %1203 = vst [vmem:[#allocation2 + $0x78] sm:$0xff] %v1191
        %1204 = vst [vmem:[#allocation2 + $0xc0] sm:$0xff] %v1192
        %1205 = vst [vmem:[#allocation2 + $0x108] sm:$0xff] %v1193
        %1206 = vst [vmem:[#allocation2 + $0x150] sm:$0xff] %v1194
        %1207 = vst [vmem:[#allocation2 + $0x198] sm:$0xff] %v1195
        %v1208 = vld [vmem:[%s336] sm:$0xf]
        %v1209 = vld [vmem:[%s336 + $0x4] sm:$0xf]
        %v1210 = vld [vmem:[%s336 + $0xc] sm:$0xf]
        %v1211 = vld [vmem:[%s336 + $0x10] sm:$0xf]
        %v1216 = vunpack.c.l.b16 %v1208
        %v1217 = vunpack.c.l.b16 %v1209
        %v1218 = vunpack.c.l.b16 %v1210
        %v1219 = vunpack.c.l.b16 %v1211
        %v1220 = vpack.c.b16 %v1217, %v1216
        %v1221 = vpack.c.b16 %v1219, %v1218
        %s1224 = scalar_lea.vmem [#allocation2], 432
        %1225 = vst [vmem:[%s1224 + $0x30] sm:$0xff] %v1220
        %1226 = vst [vmem:[%s1224 + $0x78] sm:$0xff] %v1221
        %v1227 = vld [vmem:[%s1153] sm:$0xf]
        %v1228 = vld [vmem:[%s1153 + $0x4] sm:$0xf]
        %v1229 = vld [vmem:[%s1153 + $0x8] sm:$0x1]
        %v1230 = vld [vmem:[%s1153 + $0xc] sm:$0xf]
        %v1231 = vld [vmem:[%s1153 + $0x10] sm:$0xf]
        %v1232 = vld [vmem:[%s1153 + $0x14] sm:$0x1]
        %v1233 = vld [vmem:[%s1153 + $0x18] sm:$0xf]
        %v1234 = vld [vmem:[%s1153 + $0x1c] sm:$0xf]
        %v1235 = vld [vmem:[%s1153 + $0x20] sm:$0x1]
        %v1236 = vld [vmem:[%s1153 + $0x24] sm:$0xf]
        %v1237 = vld [vmem:[%s1153 + $0x28] sm:$0xf]
        %v1238 = vld [vmem:[%s1153 + $0x2c] sm:$0x1]
        %v1239 = vld [vmem:[%s1153 + $0x30] sm:$0xf]
        %v1240 = vld [vmem:[%s1153 + $0x34] sm:$0xf]
        %v1241 = vld [vmem:[%s1153 + $0x38] sm:$0x1]
        %v1242 = vld [vmem:[%s1153 + $0x3c] sm:$0xf]
        %v1243 = vld [vmem:[%s1153 + $0x40] sm:$0xf]
        %v1244 = vld [vmem:[%s1153 + $0x44] sm:$0x1]
        %v1263 = vunpack.c.l.b16 %v1227
        %v1264 = vunpack.c.l.b16 %v1228
        %v1265 = vunpack.c.l.b16 %v1229
        %v1266 = vunpack.c.l.b16 %v1230
        %v1267 = vunpack.c.l.b16 %v1231
        %v1268 = vunpack.c.l.b16 %v1232
        %v1269 = vunpack.c.l.b16 %v1233
        %v1270 = vunpack.c.l.b16 %v1234
        %v1271 = vunpack.c.l.b16 %v1235
        %v1272 = vunpack.c.l.b16 %v1236
        %v1273 = vunpack.c.l.b16 %v1237
        %v1274 = vunpack.c.l.b16 %v1238
        %v1275 = vunpack.c.l.b16 %v1239
        %v1276 = vunpack.c.l.b16 %v1240
        %v1277 = vunpack.c.l.b16 %v1241
        %v1278 = vunpack.c.l.b16 %v1242
        %v1279 = vunpack.c.l.b16 %v1243
        %v1280 = vunpack.c.l.b16 %v1244
        %v1281 = vpack.c.b16 %v1264, %v1263
        %v1282 = vpack.c.b16 %v1265, %v1265
        %v1283 = vpack.c.b16 %v1267, %v1266
        %v1284 = vpack.c.b16 %v1268, %v1268
        %v1285 = vpack.c.b16 %v1270, %v1269
        %v1286 = vpack.c.b16 %v1271, %v1271
        %v1287 = vpack.c.b16 %v1273, %v1272
        %v1288 = vpack.c.b16 %v1274, %v1274
        %v1289 = vpack.c.b16 %v1276, %v1275
        %v1290 = vpack.c.b16 %v1277, %v1277
        %v1291 = vpack.c.b16 %v1279, %v1278
        %v1292 = vpack.c.b16 %v1280, %v1280
        %v1294 = vshrl.u32 %v1281, 16
        %v1296 = vshll.u32 %v1281, 16
        %v1298 = vrot.slane %v1296, 1
        %v1299 = vor.u32 %v1294, %v1298
        %v1301 = vshll.u32 %v1282, 16
        %v1303 = vrot.slane %v1301, 1
        %v1304 = vsel %vm509, %v1299, %v1303
        %v1306 = vshrl.u32 %v1283, 16
        %v1308 = vshll.u32 %v1283, 16
        %v1310 = vrot.slane %v1308, 1
        %v1311 = vor.u32 %v1306, %v1310
        %v1313 = vshll.u32 %v1284, 16
        %v1315 = vrot.slane %v1313, 1
        %v1316 = vsel %vm509, %v1311, %v1315
        %v1318 = vshrl.u32 %v1285, 16
        %v1320 = vshll.u32 %v1285, 16
        %v1322 = vrot.slane %v1320, 1
        %v1323 = vor.u32 %v1318, %v1322
        %v1325 = vshll.u32 %v1286, 16
        %v1327 = vrot.slane %v1325, 1
        %v1328 = vsel %vm509, %v1323, %v1327
        %v1330 = vshrl.u32 %v1287, 16
        %v1332 = vshll.u32 %v1287, 16
        %v1334 = vrot.slane %v1332, 1
        %v1335 = vor.u32 %v1330, %v1334
        %v1337 = vshll.u32 %v1288, 16
        %v1339 = vrot.slane %v1337, 1
        %v1340 = vsel %vm509, %v1335, %v1339
        %v1342 = vshrl.u32 %v1289, 16
        %v1344 = vshll.u32 %v1289, 16
        %v1346 = vrot.slane %v1344, 1
        %v1347 = vor.u32 %v1342, %v1346
        %v1349 = vshll.u32 %v1290, 16
        %v1351 = vrot.slane %v1349, 1
        %v1352 = vsel %vm509, %v1347, %v1351
        %v1354 = vshrl.u32 %v1291, 16
        %v1356 = vshll.u32 %v1291, 16
        %v1358 = vrot.slane %v1356, 1
        %v1359 = vor.u32 %v1354, %v1358
        %v1361 = vshll.u32 %v1292, 16
        %v1363 = vrot.slane %v1361, 1
        %v1364 = vsel %vm509, %v1359, %v1363
        %1371 = vst [vmem:[#allocation2 + $0x38] sm:$0xff] %v1304
        %1372 = vst [vmem:[#allocation2 + $0x80] sm:$0xff] %v1316
        %1373 = vst [vmem:[#allocation2 + $0xc8] sm:$0xff] %v1328
        %1374 = vst [vmem:[#allocation2 + $0x110] sm:$0xff] %v1340
        %1375 = vst [vmem:[#allocation2 + $0x158] sm:$0xff] %v1352
        %1376 = vst [vmem:[#allocation2 + $0x1a0] sm:$0xff] %v1364
        %v1377 = vld [vmem:[%s336] sm:$0xf]
        %v1378 = vld [vmem:[%s336 + $0x4] sm:$0xf]
        %v1379 = vld [vmem:[%s336 + $0x8] sm:$0x1]
        %v1380 = vld [vmem:[%s336 + $0xc] sm:$0xf]
        %v1381 = vld [vmem:[%s336 + $0x10] sm:$0xf]
        %v1382 = vld [vmem:[%s336 + $0x14] sm:$0x1]
        %v1389 = vunpack.c.l.b16 %v1377
        %v1390 = vunpack.c.l.b16 %v1378
        %v1391 = vunpack.c.l.b16 %v1379
        %v1392 = vunpack.c.l.b16 %v1380
        %v1393 = vunpack.c.l.b16 %v1381
        %v1394 = vunpack.c.l.b16 %v1382
        %v1395 = vpack.c.b16 %v1390, %v1389
        %v1396 = vpack.c.b16 %v1391, %v1391
        %v1397 = vpack.c.b16 %v1393, %v1392
        %v1398 = vpack.c.b16 %v1394, %v1394
        %v1400 = vshrl.u32 %v1395, 16
        %v1402 = vshll.u32 %v1395, 16
        %v1404 = vrot.slane %v1402, 1
        %v1405 = vor.u32 %v1400, %v1404
        %v1407 = vshll.u32 %v1396, 16
        %v1409 = vrot.slane %v1407, 1
        %v1410 = vsel %vm509, %v1405, %v1409
        %v1412 = vshrl.u32 %v1397, 16
        %v1414 = vshll.u32 %v1397, 16
        %v1416 = vrot.slane %v1414, 1
        %v1417 = vor.u32 %v1412, %v1416
        %v1419 = vshll.u32 %v1398, 16
        %v1421 = vrot.slane %v1419, 1
        %v1422 = vsel %vm509, %v1417, %v1421
        %1425 = vst [vmem:[%s1224 + $0x38] sm:$0xff] %v1410
        %1426 = vst [vmem:[%s1224 + $0x80] sm:$0xff] %v1422
        %v1427 = vld [vmem:[%s1153] sm:$0xe]
        %v1428 = vld [vmem:[%s1153 + $0x4] sm:$0xf]
        %v1429 = vld [vmem:[%s1153 + $0x8] sm:$0x1]
        %v1430 = vld [vmem:[%s1153 + $0xc] sm:$0xe]
        %v1431 = vld [vmem:[%s1153 + $0x10] sm:$0xf]
        %v1432 = vld [vmem:[%s1153 + $0x14] sm:$0x1]
        %v1433 = vld [vmem:[%s1153 + $0x18] sm:$0xe]
        %v1434 = vld [vmem:[%s1153 + $0x1c] sm:$0xf]
        %v1435 = vld [vmem:[%s1153 + $0x20] sm:$0x1]
        %v1436 = vld [vmem:[%s1153 + $0x24] sm:$0xe]
        %v1437 = vld [vmem:[%s1153 + $0x28] sm:$0xf]
        %v1438 = vld [vmem:[%s1153 + $0x2c] sm:$0x1]
        %v1439 = vld [vmem:[%s1153 + $0x30] sm:$0xe]
        %v1440 = vld [vmem:[%s1153 + $0x34] sm:$0xf]
        %v1441 = vld [vmem:[%s1153 + $0x38] sm:$0x1]
        %v1442 = vld [vmem:[%s1153 + $0x3c] sm:$0xe]
        %v1443 = vld [vmem:[%s1153 + $0x40] sm:$0xf]
        %v1444 = vld [vmem:[%s1153 + $0x44] sm:$0x1]
        %v1463 = vunpack.c.l.b16 %v1427
        %v1464 = vunpack.c.l.b16 %v1428
        %v1465 = vunpack.c.l.b16 %v1429
        %v1466 = vunpack.c.l.b16 %v1430
        %v1467 = vunpack.c.l.b16 %v1431
        %v1468 = vunpack.c.l.b16 %v1432
        %v1469 = vunpack.c.l.b16 %v1433
        %v1470 = vunpack.c.l.b16 %v1434
        %v1471 = vunpack.c.l.b16 %v1435
        %v1472 = vunpack.c.l.b16 %v1436
        %v1473 = vunpack.c.l.b16 %v1437
        %v1474 = vunpack.c.l.b16 %v1438
        %v1475 = vunpack.c.l.b16 %v1439
        %v1476 = vunpack.c.l.b16 %v1440
        %v1477 = vunpack.c.l.b16 %v1441
        %v1478 = vunpack.c.l.b16 %v1442
        %v1479 = vunpack.c.l.b16 %v1443
        %v1480 = vunpack.c.l.b16 %v1444
        %v1481 = vpack.c.b16 %v1464, %v1463
        %v1482 = vpack.c.b16 %v1465, %v1465
        %v1483 = vpack.c.b16 %v1467, %v1466
        %v1484 = vpack.c.b16 %v1468, %v1468
        %v1485 = vpack.c.b16 %v1470, %v1469
        %v1486 = vpack.c.b16 %v1471, %v1471
        %v1487 = vpack.c.b16 %v1473, %v1472
        %v1488 = vpack.c.b16 %v1474, %v1474
        %v1489 = vpack.c.b16 %v1476, %v1475
        %v1490 = vpack.c.b16 %v1477, %v1477
        %v1491 = vpack.c.b16 %v1479, %v1478
        %v1492 = vpack.c.b16 %v1480, %v1480
        %v1493 = vrot.slane %v1481, 1
        %v1494 = vrot.slane %v1482, 1
        %v1495 = vsel %vm710, %v1493, %v1494
        %v1496 = vrot.slane %v1483, 1
        %v1497 = vrot.slane %v1484, 1
        %v1498 = vsel %vm710, %v1496, %v1497
        %v1499 = vrot.slane %v1485, 1
        %v1500 = vrot.slane %v1486, 1
        %v1501 = vsel %vm710, %v1499, %v1500
        %v1502 = vrot.slane %v1487, 1
        %v1503 = vrot.slane %v1488, 1
        %v1504 = vsel %vm710, %v1502, %v1503
        %v1505 = vrot.slane %v1489, 1
        %v1506 = vrot.slane %v1490, 1
        %v1507 = vsel %vm710, %v1505, %v1506
        %v1508 = vrot.slane %v1491, 1
        %v1509 = vrot.slane %v1492, 1
        %v1510 = vsel %vm710, %v1508, %v1509
        %1517 = vst [vmem:[#allocation2 + $0x40] sm:$0xff] %v1495
        %1518 = vst [vmem:[#allocation2 + $0x88] sm:$0xff] %v1498
        %1519 = vst [vmem:[#allocation2 + $0xd0] sm:$0xff] %v1501
        %1520 = vst [vmem:[#allocation2 + $0x118] sm:$0xff] %v1504
        %1521 = vst [vmem:[#allocation2 + $0x160] sm:$0xff] %v1507
        %1522 = vst [vmem:[#allocation2 + $0x1a8] sm:$0xff] %v1510
        %v1523 = vld [vmem:[%s336] sm:$0xe]
        %v1524 = vld [vmem:[%s336 + $0x4] sm:$0xf]
        %v1525 = vld [vmem:[%s336 + $0x8] sm:$0x1]
        %v1526 = vld [vmem:[%s336 + $0xc] sm:$0xe]
        %v1527 = vld [vmem:[%s336 + $0x10] sm:$0xf]
        %v1528 = vld [vmem:[%s336 + $0x14] sm:$0x1]
        %v1535 = vunpack.c.l.b16 %v1523
        %v1536 = vunpack.c.l.b16 %v1524
        %v1537 = vunpack.c.l.b16 %v1525
        %v1538 = vunpack.c.l.b16 %v1526
        %v1539 = vunpack.c.l.b16 %v1527
        %v1540 = vunpack.c.l.b16 %v1528
        %v1541 = vpack.c.b16 %v1536, %v1535
        %v1542 = vpack.c.b16 %v1537, %v1537
        %v1543 = vpack.c.b16 %v1539, %v1538
        %v1544 = vpack.c.b16 %v1540, %v1540
        %v1545 = vrot.slane %v1541, 1
        %v1546 = vrot.slane %v1542, 1
        %v1547 = vsel %vm710, %v1545, %v1546
        %v1548 = vrot.slane %v1543, 1
        %v1549 = vrot.slane %v1544, 1
        %v1550 = vsel %vm710, %v1548, %v1549
        %1553 = vst [vmem:[%s1224 + $0x40] sm:$0xff] %v1547
        %1554 = vst [vmem:[%s1224 + $0x88] sm:$0xff] %v1550
        %v1555 = vld [vmem:[#allocation2] sm:$0xff]
        %v1556 = vld [vmem:[#allocation2 + $0x8] sm:$0xff]
        %v1557 = vld [vmem:[#allocation2 + $0x10] sm:$0xff]
        %v1558 = vld [vmem:[#allocation2 + $0x18] sm:$0xff]
        %v1559 = vld [vmem:[#allocation2 + $0x20] sm:$0xff]
        %v1560 = vld [vmem:[#allocation2 + $0x28] sm:$0xff]
        %v1561 = vld [vmem:[#allocation2 + $0x30] sm:$0xff]
        %v1562 = vld [vmem:[#allocation2 + $0x38] sm:$0xff]
        %v1563 = vld [vmem:[#allocation2 + $0x40] sm:$0xff]
        %v1564 = vld [vmem:[#allocation2 + $0x48] sm:$0xff]
        %v1565 = vld [vmem:[#allocation2 + $0x50] sm:$0xff]
        %v1566 = vld [vmem:[#allocation2 + $0x58] sm:$0xff]
        %v1567 = vld [vmem:[#allocation2 + $0x60] sm:$0xff]
        %v1568 = vld [vmem:[#allocation2 + $0x68] sm:$0xff]
        %v1569 = vld [vmem:[#allocation2 + $0x70] sm:$0xff]
        %v1570 = vld [vmem:[#allocation2 + $0x78] sm:$0xff]
        %v1571 = vld [vmem:[#allocation2 + $0x80] sm:$0xff]
        %v1572 = vld [vmem:[#allocation2 + $0x88] sm:$0xff]
        %v1573 = vld [vmem:[#allocation2 + $0x90] sm:$0xff]
        %v1574 = vld [vmem:[#allocation2 + $0x98] sm:$0xff]
        %v1575 = vld [vmem:[#allocation2 + $0xa0] sm:$0xff]
        %v1576 = vld [vmem:[#allocation2 + $0xa8] sm:$0xff]
        %v1577 = vld [vmem:[#allocation2 + $0xb0] sm:$0xff]
        %v1578 = vld [vmem:[#allocation2 + $0xb8] sm:$0xff]
        %v1579 = vld [vmem:[#allocation2 + $0xc0] sm:$0xff]
        %v1580 = vld [vmem:[#allocation2 + $0xc8] sm:$0xff]
        %v1581 = vld [vmem:[#allocation2 + $0xd0] sm:$0xff]
        %v1582 = vld [vmem:[#allocation2 + $0xd8] sm:$0xff]
        %v1583 = vld [vmem:[#allocation2 + $0xe0] sm:$0xff]
        %v1584 = vld [vmem:[#allocation2 + $0xe8] sm:$0xff]
        %v1585 = vld [vmem:[#allocation2 + $0xf0] sm:$0xff]
        %v1586 = vld [vmem:[#allocation2 + $0xf8] sm:$0xff]
        %v1587 = vld [vmem:[#allocation2 + $0x100] sm:$0xff]
        %v1588 = vld [vmem:[#allocation2 + $0x108] sm:$0xff]
        %v1589 = vld [vmem:[#allocation2 + $0x110] sm:$0xff]
        %v1590 = vld [vmem:[#allocation2 + $0x118] sm:$0xff]
        %v1591 = vld [vmem:[#allocation2 + $0x120] sm:$0xff]
        %v1592 = vld [vmem:[#allocation2 + $0x128] sm:$0xff]
        %v1593 = vld [vmem:[#allocation2 + $0x130] sm:$0xff]
        %v1594 = vld [vmem:[#allocation2 + $0x138] sm:$0xff]
        %v1595 = vld [vmem:[#allocation2 + $0x140] sm:$0xff]
        %v1596 = vld [vmem:[#allocation2 + $0x148] sm:$0xff]
        %v1597 = vld [vmem:[#allocation2 + $0x150] sm:$0xff]
        %v1598 = vld [vmem:[#allocation2 + $0x158] sm:$0xff]
        %v1599 = vld [vmem:[#allocation2 + $0x160] sm:$0xff]
        %v1600 = vld [vmem:[#allocation2 + $0x168] sm:$0xff]
        %v1601 = vld [vmem:[#allocation2 + $0x170] sm:$0xff]
        %v1602 = vld [vmem:[#allocation2 + $0x178] sm:$0xff]
        %v1603 = vld [vmem:[#allocation2 + $0x180] sm:$0xff]
        %v1604 = vld [vmem:[#allocation2 + $0x188] sm:$0xff]
        %v1605 = vld [vmem:[#allocation2 + $0x190] sm:$0xff]
        %v1606 = vld [vmem:[#allocation2 + $0x198] sm:$0xff]
        %v1607 = vld [vmem:[#allocation2 + $0x1a0] sm:$0xff]
        %v1608 = vld [vmem:[#allocation2 + $0x1a8] sm:$0xff]
        %v1609 = vld [vmem:[#allocation2 + $0x1b0] sm:$0xff]
        %v1610 = vld [vmem:[#allocation2 + $0x1b8] sm:$0xff]
        %v1611 = vld [vmem:[#allocation2 + $0x1c0] sm:$0xff]
        %v1612 = vld [vmem:[#allocation2 + $0x1c8] sm:$0xff]
        %v1613 = vld [vmem:[#allocation2 + $0x1d0] sm:$0xff]
        %v1614 = vld [vmem:[#allocation2 + $0x1d8] sm:$0xff]
        %v1615 = vld [vmem:[#allocation2 + $0x1e0] sm:$0xff]
        %v1616 = vld [vmem:[#allocation2 + $0x1e8] sm:$0xff]
        %v1617 = vld [vmem:[#allocation2 + $0x1f0] sm:$0xff]
        %v1618 = vld [vmem:[#allocation2 + $0x1f8] sm:$0xff]
        %v1619 = vld [vmem:[#allocation2 + $0x200] sm:$0xff]
        %v1620 = vld [vmem:[#allocation2 + $0x208] sm:$0xff]
        %v1621 = vld [vmem:[#allocation2 + $0x210] sm:$0xff]
        %v1622 = vld [vmem:[#allocation2 + $0x218] sm:$0xff]
        %v1623 = vld [vmem:[#allocation2 + $0x220] sm:$0xff]
        %v1624 = vld [vmem:[#allocation2 + $0x228] sm:$0xff]
        %v1625 = vld [vmem:[#allocation2 + $0x230] sm:$0xff]
        %v1626 = vld [vmem:[#allocation2 + $0x238] sm:$0xff]
        %v1627 = vld [vmem:[%s343] sm:$0xf]
        %v1628 = vld [vmem:[%s343 + $0x4] sm:$0xf]
        %v1629 = vld [vmem:[%s343 + $0x8] sm:$0xf]
        %v1630 = vld [vmem:[%s343 + $0xc] sm:$0xf]
        %v1631 = vld [vmem:[%s343 + $0x10] sm:$0xf]
        %v1632 = vld [vmem:[%s343 + $0x14] sm:$0xf]
        %v1633 = vld [vmem:[%s343 + $0x18] sm:$0xf]
        %v1634 = vld [vmem:[%s343 + $0x1c] sm:$0xf]
        %v1635 = vld [vmem:[%s343 + $0x20] sm:$0xf]
        %v1636 = vld [vmem:[%s343 + $0x24] sm:$0xf]
        %v1637 = vld [vmem:[%s343 + $0x28] sm:$0xf]
        %v1638 = vld [vmem:[%s343 + $0x2c] sm:$0xf]
        %v1639 = vld [vmem:[%s343 + $0x30] sm:$0xf]
        %v1640 = vld [vmem:[%s343 + $0x34] sm:$0xf]
        %v1641 = vld [vmem:[%s343 + $0x38] sm:$0xf]
        %v1642 = vld [vmem:[%s343 + $0x3c] sm:$0xf]
        %v1643 = vld [vmem:[%s343 + $0x40] sm:$0xf]
        %v1644 = vld [vmem:[%s343 + $0x44] sm:$0xf]
        %v1645 = vld [vmem:[%s343 + $0x48] sm:$0xf]
        %v1646 = vld [vmem:[%s343 + $0x4c] sm:$0xf]
        %v1647 = vld [vmem:[%s343 + $0x50] sm:$0xf]
        %v1648 = vld [vmem:[%s343 + $0x54] sm:$0xf]
        %v1649 = vld [vmem:[%s343 + $0x58] sm:$0xf]
        %v1650 = vld [vmem:[%s343 + $0x5c] sm:$0xf]
        %v1651 = vld [vmem:[%s343 + $0x60] sm:$0xf]
        %v1652 = vld [vmem:[%s343 + $0x64] sm:$0xf]
        %v1653 = vld [vmem:[%s343 + $0x68] sm:$0xf]
        %v1654 = vld [vmem:[%s343 + $0x6c] sm:$0xf]
        %v1655 = vld [vmem:[%s343 + $0x70] sm:$0xf]
        %v1656 = vld [vmem:[%s343 + $0x74] sm:$0xf]
        %v1657 = vld [vmem:[%s343 + $0x78] sm:$0xf]
        %v1658 = vld [vmem:[%s343 + $0x7c] sm:$0xf]
        %v1659 = vld [vmem:[%s343 + $0x80] sm:$0xf]
        %v1660 = vld [vmem:[%s343 + $0x84] sm:$0xf]
        %v1661 = vld [vmem:[%s343 + $0x88] sm:$0xf]
        %v1662 = vld [vmem:[%s343 + $0x8c] sm:$0xf]
        %v1663 = vld [vmem:[%s343 + $0x90] sm:$0xf]
        %v1664 = vld [vmem:[%s343 + $0x94] sm:$0xf]
        %v1665 = vld [vmem:[%s343 + $0x98] sm:$0xf]
        %v1666 = vld [vmem:[%s343 + $0x9c] sm:$0xf]
        %v1667 = vld [vmem:[%s343 + $0xa0] sm:$0xf]
        %v1668 = vld [vmem:[%s343 + $0xa4] sm:$0xf]
        %v1669 = vld [vmem:[%s343 + $0xa8] sm:$0xf]
        %v1670 = vld [vmem:[%s343 + $0xac] sm:$0xf]
        %v1671 = vld [vmem:[%s343 + $0xb0] sm:$0xf]
        %v1672 = vld [vmem:[%s343 + $0xb4] sm:$0xf]
        %v1673 = vld [vmem:[%s343 + $0xb8] sm:$0xf]
        %v1674 = vld [vmem:[%s343 + $0xbc] sm:$0xf]
        %v1675 = vld [vmem:[%s343 + $0xc0] sm:$0xf]
        %v1676 = vld [vmem:[%s343 + $0xc4] sm:$0xf]
        %v1677 = vld [vmem:[%s343 + $0xc8] sm:$0xf]
        %v1678 = vld [vmem:[%s343 + $0xcc] sm:$0xf]
        %v1679 = vld [vmem:[%s343 + $0xd0] sm:$0xf]
        %v1680 = vld [vmem:[%s343 + $0xd4] sm:$0xf]
        %v1681 = vld [vmem:[%s343 + $0xd8] sm:$0xf]
        %v1682 = vld [vmem:[%s343 + $0xdc] sm:$0xf]
        %v1683 = vld [vmem:[%s343 + $0xe0] sm:$0xf]
        %v1684 = vld [vmem:[%s343 + $0xe4] sm:$0xf]
        %v1685 = vld [vmem:[%s343 + $0xe8] sm:$0xf]
        %v1686 = vld [vmem:[%s343 + $0xec] sm:$0xf]
        %v1687 = vld [vmem:[%s343 + $0xf0] sm:$0xf]
        %v1688 = vld [vmem:[%s343 + $0xf4] sm:$0xf]
        %v1689 = vld [vmem:[%s343 + $0xf8] sm:$0xf]
        %v1690 = vld [vmem:[%s343 + $0xfc] sm:$0xf]
        %v1691 = vld [vmem:[%s343 + $0x100] sm:$0xf]
        %v1692 = vld [vmem:[%s343 + $0x104] sm:$0xf]
        %v1693 = vld [vmem:[%s343 + $0x108] sm:$0xf]
        %v1694 = vld [vmem:[%s343 + $0x10c] sm:$0xf]
        %v1695 = vld [vmem:[%s343 + $0x110] sm:$0xf]
        %v1696 = vld [vmem:[%s343 + $0x114] sm:$0xf]
        %v1697 = vld [vmem:[%s343 + $0x118] sm:$0xf]
        %v1698 = vld [vmem:[%s343 + $0x11c] sm:$0xf]
        %v1699 = vld [vmem:[%s343 + $0x120] sm:$0xf]
        %v1700 = vld [vmem:[%s343 + $0x124] sm:$0xf]
        %v1701 = vld [vmem:[%s343 + $0x128] sm:$0xf]
        %v1702 = vld [vmem:[%s343 + $0x12c] sm:$0xf]
        %v1703 = vld [vmem:[%s343 + $0x130] sm:$0xf]
        %v1704 = vld [vmem:[%s343 + $0x134] sm:$0xf]
        %v1705 = vld [vmem:[%s343 + $0x138] sm:$0xf]
        %v1706 = vld [vmem:[%s343 + $0x13c] sm:$0xf]
        %v1707 = vld [vmem:[%s343 + $0x140] sm:$0xf]
        %v1708 = vld [vmem:[%s343 + $0x144] sm:$0xf]
        %v1709 = vld [vmem:[%s343 + $0x148] sm:$0xf]
        %v1710 = vld [vmem:[%s343 + $0x14c] sm:$0xf]
        %v1711 = vld [vmem:[%s343 + $0x150] sm:$0xf]
        %v1712 = vld [vmem:[%s343 + $0x154] sm:$0xf]
        %v1713 = vld [vmem:[%s343 + $0x158] sm:$0xf]
        %v1714 = vld [vmem:[%s343 + $0x15c] sm:$0xf]
        %v1715 = vld [vmem:[%s343 + $0x160] sm:$0xf]
        %v1716 = vld [vmem:[%s343 + $0x164] sm:$0xf]
        %v1717 = vld [vmem:[%s343 + $0x168] sm:$0xf]
        %v1718 = vld [vmem:[%s343 + $0x16c] sm:$0xf]
        %v1719 = vld [vmem:[%s343 + $0x170] sm:$0xf]
        %v1720 = vld [vmem:[%s343 + $0x174] sm:$0xf]
        %v1721 = vld [vmem:[%s343 + $0x178] sm:$0xf]
        %v1722 = vld [vmem:[%s343 + $0x17c] sm:$0xf]
        %v1723 = vld [vmem:[%s343 + $0x180] sm:$0xf]
        %v1724 = vld [vmem:[%s343 + $0x184] sm:$0xf]
        %v1725 = vld [vmem:[%s343 + $0x188] sm:$0xf]
        %v1726 = vld [vmem:[%s343 + $0x18c] sm:$0xf]
        %v1727 = vld [vmem:[%s343 + $0x190] sm:$0xf]
        %v1728 = vld [vmem:[%s343 + $0x194] sm:$0xf]
        %v1729 = vld [vmem:[%s343 + $0x198] sm:$0xf]
        %v1730 = vld [vmem:[%s343 + $0x19c] sm:$0xf]
        %v1731 = vld [vmem:[%s343 + $0x1a0] sm:$0xf]
        %v1732 = vld [vmem:[%s343 + $0x1a4] sm:$0xf]
        %v1733 = vld [vmem:[%s343 + $0x1a8] sm:$0xf]
        %v1734 = vld [vmem:[%s343 + $0x1ac] sm:$0xf]
        %v1735 = vld [vmem:[%s343 + $0x1b0] sm:$0xf]
        %v1736 = vld [vmem:[%s343 + $0x1b4] sm:$0xf]
        %v1737 = vld [vmem:[%s343 + $0x1b8] sm:$0xf]
        %v1738 = vld [vmem:[%s343 + $0x1bc] sm:$0xf]
        %v1739 = vld [vmem:[%s343 + $0x1c0] sm:$0xf]
        %v1740 = vld [vmem:[%s343 + $0x1c4] sm:$0xf]
        %v1741 = vld [vmem:[%s343 + $0x1c8] sm:$0xf]
        %v1742 = vld [vmem:[%s343 + $0x1cc] sm:$0xf]
        %v1743 = vld [vmem:[%s343 + $0x1d0] sm:$0xf]
        %v1744 = vld [vmem:[%s343 + $0x1d4] sm:$0xf]
        %v1745 = vld [vmem:[%s343 + $0x1d8] sm:$0xf]
        %v1746 = vld [vmem:[%s343 + $0x1dc] sm:$0xf]
        %v1747 = vld [vmem:[%s343 + $0x1e0] sm:$0xf]
        %v1748 = vld [vmem:[%s343 + $0x1e4] sm:$0xf]
        %v1749 = vld [vmem:[%s343 + $0x1e8] sm:$0xf]
        %v1750 = vld [vmem:[%s343 + $0x1ec] sm:$0xf]
        %v1751 = vld [vmem:[%s343 + $0x1f0] sm:$0xf]
        %v1752 = vld [vmem:[%s343 + $0x1f4] sm:$0xf]
        %v1753 = vld [vmem:[%s343 + $0x1f8] sm:$0xf]
        %v1754 = vld [vmem:[%s343 + $0x1fc] sm:$0xf]
        %v1755 = vld [vmem:[%s343 + $0x200] sm:$0xf]
        %v1756 = vld [vmem:[%s343 + $0x204] sm:$0xf]
        %v1757 = vld [vmem:[%s343 + $0x208] sm:$0xf]
        %v1758 = vld [vmem:[%s343 + $0x20c] sm:$0xf]
        %v1759 = vld [vmem:[%s343 + $0x210] sm:$0xf]
        %v1760 = vld [vmem:[%s343 + $0x214] sm:$0xf]
        %v1761 = vld [vmem:[%s343 + $0x218] sm:$0xf]
        %v1762 = vld [vmem:[%s343 + $0x21c] sm:$0xf]
        %v1763 = vld [vmem:[%s343 + $0x220] sm:$0xf]
        %v1764 = vld [vmem:[%s343 + $0x224] sm:$0xf]
        %v1765 = vld [vmem:[%s343 + $0x228] sm:$0xf]
        %v1766 = vld [vmem:[%s343 + $0x22c] sm:$0xf]
        %v1767 = vld [vmem:[%s343 + $0x230] sm:$0xf]
        %v1768 = vld [vmem:[%s343 + $0x234] sm:$0xf]
        %v1769 = vld [vmem:[%s343 + $0x238] sm:$0xf]
        %v1770 = vld [vmem:[%s343 + $0x23c] sm:$0xf]
        %v1771 = vld [vmem:[%s346] sm:$0x1]
        %v1773 = vlaneseq
        %v1774 = vshrl.u32 %v1773, 7
        %v1775 = vsub.s32 0, %v1774
        %v1776 = vrot.slane %v1771, %v1775
        %v1922 = vunpack.c.l.b16 %v1627
        %v1923 = vunpack.c.l.b16 %v1628
        %v1924 = vunpack.c.l.b16 %v1629
        %v1925 = vunpack.c.l.b16 %v1630
        %v1926 = vunpack.c.l.b16 %v1631
        %v1927 = vunpack.c.l.b16 %v1632
        %v1928 = vunpack.c.l.b16 %v1633
        %v1929 = vunpack.c.l.b16 %v1634
        %v1930 = vunpack.c.l.b16 %v1635
        %v1931 = vunpack.c.l.b16 %v1636
        %v1932 = vunpack.c.l.b16 %v1637
        %v1933 = vunpack.c.l.b16 %v1638
        %v1934 = vunpack.c.l.b16 %v1639
        %v1935 = vunpack.c.l.b16 %v1640
        %v1936 = vunpack.c.l.b16 %v1641
        %v1937 = vunpack.c.l.b16 %v1642
        %v1938 = vunpack.c.l.b16 %v1643
        %v1939 = vunpack.c.l.b16 %v1644
        %v1940 = vunpack.c.l.b16 %v1645
        %v1941 = vunpack.c.l.b16 %v1646
        %v1942 = vunpack.c.l.b16 %v1647
        %v1943 = vunpack.c.l.b16 %v1648
        %v1944 = vunpack.c.l.b16 %v1649
        %v1945 = vunpack.c.l.b16 %v1650
        %v1946 = vunpack.c.l.b16 %v1651
        %v1947 = vunpack.c.l.b16 %v1652
        %v1948 = vunpack.c.l.b16 %v1653
        %v1949 = vunpack.c.l.b16 %v1654
        %v1950 = vunpack.c.l.b16 %v1655
        %v1951 = vunpack.c.l.b16 %v1656
        %v1952 = vunpack.c.l.b16 %v1657
        %v1953 = vunpack.c.l.b16 %v1658
        %v1954 = vunpack.c.l.b16 %v1659
        %v1955 = vunpack.c.l.b16 %v1660
        %v1956 = vunpack.c.l.b16 %v1661
        %v1957 = vunpack.c.l.b16 %v1662
        %v1958 = vunpack.c.l.b16 %v1663
        %v1959 = vunpack.c.l.b16 %v1664
        %v1960 = vunpack.c.l.b16 %v1665
        %v1961 = vunpack.c.l.b16 %v1666
        %v1962 = vunpack.c.l.b16 %v1667
        %v1963 = vunpack.c.l.b16 %v1668
        %v1964 = vunpack.c.l.b16 %v1669
        %v1965 = vunpack.c.l.b16 %v1670
        %v1966 = vunpack.c.l.b16 %v1671
        %v1967 = vunpack.c.l.b16 %v1672
        %v1968 = vunpack.c.l.b16 %v1673
        %v1969 = vunpack.c.l.b16 %v1674
        %v1970 = vunpack.c.l.b16 %v1675
        %v1971 = vunpack.c.l.b16 %v1676
        %v1972 = vunpack.c.l.b16 %v1677
        %v1973 = vunpack.c.l.b16 %v1678
        %v1974 = vunpack.c.l.b16 %v1679
        %v1975 = vunpack.c.l.b16 %v1680
        %v1976 = vunpack.c.l.b16 %v1681
        %v1977 = vunpack.c.l.b16 %v1682
        %v1978 = vunpack.c.l.b16 %v1683
        %v1979 = vunpack.c.l.b16 %v1684
        %v1980 = vunpack.c.l.b16 %v1685
        %v1981 = vunpack.c.l.b16 %v1686
        %v1982 = vunpack.c.l.b16 %v1687
        %v1983 = vunpack.c.l.b16 %v1688
        %v1984 = vunpack.c.l.b16 %v1689
        %v1985 = vunpack.c.l.b16 %v1690
        %v1986 = vunpack.c.l.b16 %v1691
        %v1987 = vunpack.c.l.b16 %v1692
        %v1988 = vunpack.c.l.b16 %v1693
        %v1989 = vunpack.c.l.b16 %v1694
        %v1990 = vunpack.c.l.b16 %v1695
        %v1991 = vunpack.c.l.b16 %v1696
        %v1992 = vunpack.c.l.b16 %v1697
        %v1993 = vunpack.c.l.b16 %v1698
        %v1994 = vunpack.c.l.b16 %v1699
        %v1995 = vunpack.c.l.b16 %v1700
        %v1996 = vunpack.c.l.b16 %v1701
        %v1997 = vunpack.c.l.b16 %v1702
        %v1998 = vunpack.c.l.b16 %v1703
        %v1999 = vunpack.c.l.b16 %v1704
        %v2000 = vunpack.c.l.b16 %v1705
        %v2001 = vunpack.c.l.b16 %v1706
        %v2002 = vunpack.c.l.b16 %v1707
        %v2003 = vunpack.c.l.b16 %v1708
        %v2004 = vunpack.c.l.b16 %v1709
        %v2005 = vunpack.c.l.b16 %v1710
        %v2006 = vunpack.c.l.b16 %v1711
        %v2007 = vunpack.c.l.b16 %v1712
        %v2008 = vunpack.c.l.b16 %v1713
        %v2009 = vunpack.c.l.b16 %v1714
        %v2010 = vunpack.c.l.b16 %v1715
        %v2011 = vunpack.c.l.b16 %v1716
        %v2012 = vunpack.c.l.b16 %v1717
        %v2013 = vunpack.c.l.b16 %v1718
        %v2014 = vunpack.c.l.b16 %v1719
        %v2015 = vunpack.c.l.b16 %v1720
        %v2016 = vunpack.c.l.b16 %v1721
        %v2017 = vunpack.c.l.b16 %v1722
        %v2018 = vunpack.c.l.b16 %v1723
        %v2019 = vunpack.c.l.b16 %v1724
        %v2020 = vunpack.c.l.b16 %v1725
        %v2021 = vunpack.c.l.b16 %v1726
        %v2022 = vunpack.c.l.b16 %v1727
        %v2023 = vunpack.c.l.b16 %v1728
        %v2024 = vunpack.c.l.b16 %v1729
        %v2025 = vunpack.c.l.b16 %v1730
        %v2026 = vunpack.c.l.b16 %v1731
        %v2027 = vunpack.c.l.b16 %v1732
        %v2028 = vunpack.c.l.b16 %v1733
        %v2029 = vunpack.c.l.b16 %v1734
        %v2030 = vunpack.c.l.b16 %v1735
        %v2031 = vunpack.c.l.b16 %v1736
        %v2032 = vunpack.c.l.b16 %v1737
        %v2033 = vunpack.c.l.b16 %v1738
        %v2034 = vunpack.c.l.b16 %v1739
        %v2035 = vunpack.c.l.b16 %v1740
        %v2036 = vunpack.c.l.b16 %v1741
        %v2037 = vunpack.c.l.b16 %v1742
        %v2038 = vunpack.c.l.b16 %v1743
        %v2039 = vunpack.c.l.b16 %v1744
        %v2040 = vunpack.c.l.b16 %v1745
        %v2041 = vunpack.c.l.b16 %v1746
        %v2042 = vunpack.c.l.b16 %v1747
        %v2043 = vunpack.c.l.b16 %v1748
        %v2044 = vunpack.c.l.b16 %v1749
        %v2045 = vunpack.c.l.b16 %v1750
        %v2046 = vunpack.c.l.b16 %v1751
        %v2047 = vunpack.c.l.b16 %v1752
        %v2048 = vunpack.c.l.b16 %v1753
        %v2049 = vunpack.c.l.b16 %v1754
        %v2050 = vunpack.c.l.b16 %v1755
        %v2051 = vunpack.c.l.b16 %v1756
        %v2052 = vunpack.c.l.b16 %v1757
        %v2053 = vunpack.c.l.b16 %v1758
        %v2054 = vunpack.c.l.b16 %v1759
        %v2055 = vunpack.c.l.b16 %v1760
        %v2056 = vunpack.c.l.b16 %v1761
        %v2057 = vunpack.c.l.b16 %v1762
        %v2058 = vunpack.c.l.b16 %v1763
        %v2059 = vunpack.c.l.b16 %v1764
        %v2060 = vunpack.c.l.b16 %v1765
        %v2061 = vunpack.c.l.b16 %v1766
        %v2062 = vunpack.c.l.b16 %v1767
        %v2063 = vunpack.c.l.b16 %v1768
        %v2064 = vunpack.c.l.b16 %v1769
        %v2065 = vunpack.c.l.b16 %v1770
        %v2066 = vpack.c.b16 %v1923, %v1922
        %v2067 = vpack.c.b16 %v1925, %v1924
        %v2068 = vpack.c.b16 %v1927, %v1926
        %v2069 = vpack.c.b16 %v1929, %v1928
        %v2070 = vpack.c.b16 %v1931, %v1930
        %v2071 = vpack.c.b16 %v1933, %v1932
        %v2072 = vpack.c.b16 %v1935, %v1934
        %v2073 = vpack.c.b16 %v1937, %v1936
        %v2074 = vpack.c.b16 %v1939, %v1938
        %v2075 = vpack.c.b16 %v1941, %v1940
        %v2076 = vpack.c.b16 %v1943, %v1942
        %v2077 = vpack.c.b16 %v1945, %v1944
        %v2078 = vpack.c.b16 %v1947, %v1946
        %v2079 = vpack.c.b16 %v1949, %v1948
        %v2080 = vpack.c.b16 %v1951, %v1950
        %v2081 = vpack.c.b16 %v1953, %v1952
        %v2082 = vpack.c.b16 %v1955, %v1954
        %v2083 = vpack.c.b16 %v1957, %v1956
        %v2084 = vpack.c.b16 %v1959, %v1958
        %v2085 = vpack.c.b16 %v1961, %v1960
        %v2086 = vpack.c.b16 %v1963, %v1962
        %v2087 = vpack.c.b16 %v1965, %v1964
        %v2088 = vpack.c.b16 %v1967, %v1966
        %v2089 = vpack.c.b16 %v1969, %v1968
        %v2090 = vpack.c.b16 %v1971, %v1970
        %v2091 = vpack.c.b16 %v1973, %v1972
        %v2092 = vpack.c.b16 %v1975, %v1974
        %v2093 = vpack.c.b16 %v1977, %v1976
        %v2094 = vpack.c.b16 %v1979, %v1978
        %v2095 = vpack.c.b16 %v1981, %v1980
        %v2096 = vpack.c.b16 %v1983, %v1982
        %v2097 = vpack.c.b16 %v1985, %v1984
        %v2098 = vpack.c.b16 %v1987, %v1986
        %v2099 = vpack.c.b16 %v1989, %v1988
        %v2100 = vpack.c.b16 %v1991, %v1990
        %v2101 = vpack.c.b16 %v1993, %v1992
        %v2102 = vpack.c.b16 %v1995, %v1994
        %v2103 = vpack.c.b16 %v1997, %v1996
        %v2104 = vpack.c.b16 %v1999, %v1998
        %v2105 = vpack.c.b16 %v2001, %v2000
        %v2106 = vpack.c.b16 %v2003, %v2002
        %v2107 = vpack.c.b16 %v2005, %v2004
        %v2108 = vpack.c.b16 %v2007, %v2006
        %v2109 = vpack.c.b16 %v2009, %v2008
        %v2110 = vpack.c.b16 %v2011, %v2010
        %v2111 = vpack.c.b16 %v2013, %v2012
        %v2112 = vpack.c.b16 %v2015, %v2014
        %v2113 = vpack.c.b16 %v2017, %v2016
        %v2114 = vpack.c.b16 %v2019, %v2018
        %v2115 = vpack.c.b16 %v2021, %v2020
        %v2116 = vpack.c.b16 %v2023, %v2022
        %v2117 = vpack.c.b16 %v2025, %v2024
        %v2118 = vpack.c.b16 %v2027, %v2026
        %v2119 = vpack.c.b16 %v2029, %v2028
        %v2120 = vpack.c.b16 %v2031, %v2030
        %v2121 = vpack.c.b16 %v2033, %v2032
        %v2122 = vpack.c.b16 %v2035, %v2034
        %v2123 = vpack.c.b16 %v2037, %v2036
        %v2124 = vpack.c.b16 %v2039, %v2038
        %v2125 = vpack.c.b16 %v2041, %v2040
        %v2126 = vpack.c.b16 %v2043, %v2042
        %v2127 = vpack.c.b16 %v2045, %v2044
        %v2128 = vpack.c.b16 %v2047, %v2046
        %v2129 = vpack.c.b16 %v2049, %v2048
        %v2130 = vpack.c.b16 %v2051, %v2050
        %v2131 = vpack.c.b16 %v2053, %v2052
        %v2132 = vpack.c.b16 %v2055, %v2054
        %v2133 = vpack.c.b16 %v2057, %v2056
        %v2134 = vpack.c.b16 %v2059, %v2058
        %v2135 = vpack.c.b16 %v2061, %v2060
        %v2136 = vpack.c.b16 %v2063, %v2062
        %v2137 = vpack.c.b16 %v2065, %v2064
        %2210 = vmatprep.subr.bf16.mxu0 0
        %2211 = vmatpush1.bf16.msra.mxu0 %v2066
        %2212 = vmatprep.subr.bf16.mxu0 0
        %2213 = vmatpush1.bf16.msra.mxu0 %v2067
        %2214 = vmatprep.subr.bf16.mxu0 0
        %2215 = vmatpush1.bf16.msra.mxu0 %v2068
        %2216 = vmatprep.subr.bf16.mxu0 0
        %2217 = vmatpush1.bf16.msra.mxu0 %v2069
        %2218 = vmatprep.subr.bf16.mxu0 0
        %2219 = vmatpush1.bf16.msra.mxu0 %v2070
        %2220 = vmatprep.subr.bf16.mxu0 0
        %2221 = vmatpush1.bf16.msra.mxu0 %v2071
        %2222 = vmatprep.subr.bf16.mxu0 0
        %2223 = vmatpush1.bf16.msra.mxu0 %v2072
        %2224 = vmatprep.subr.bf16.mxu0 0
        %2225 = vmatpush1.bf16.msra.mxu0 %v2073
        %2226 = vmatprep.subr.bf16.mxu0 0
        %2227 = vmatpush1.bf16.msra.mxu0 %v2074
        %2228 = vmatprep.subr.bf16.mxu0 0
        %2229 = vmatpush1.bf16.msra.mxu0 %v2075
        %2230 = vmatprep.subr.bf16.mxu0 0
        %2231 = vmatpush1.bf16.msra.mxu0 %v2076
        %2232 = vmatprep.subr.bf16.mxu0 0
        %2233 = vmatpush1.bf16.msra.mxu0 %v2077
        %2234 = vmatprep.subr.bf16.mxu0 0
        %2235 = vmatpush1.bf16.msra.mxu0 %v2078
        %2236 = vmatprep.subr.bf16.mxu0 0
        %2237 = vmatpush1.bf16.msra.mxu0 %v2079
        %2238 = vmatprep.subr.bf16.mxu0 0
        %2239 = vmatpush1.bf16.msra.mxu0 %v2080
        %2240 = vmatprep.subr.bf16.mxu0 0
        %2241 = vmatpush1.bf16.msra.mxu0 %v2081
        %2242 = vmatprep.mubr.bf16.mxu0 %v1556
        %2243 = vmatmul.mubr.bf16.gmra.mrb[0].mxu0 %v1555
        %v2244 = vpop.f32.mrb[0].mxu0
        %v2245 = vadd.f32 %v1776, %v2244
        %v2246 = vpop.f32.mrb[0].mxu0
        %v2247 = vpop.f32.mrb[0].mxu0
        %v2248 = vadd.f32 %v1776, %v2247
        %v2249 = vpop.f32.mrb[0].mxu0
        %2250 = vmatprep.mubr.bf16.mxu0 %v1565
        %2251 = vmatmul.mubr.bf16.gmra.mrb[0].mxu0 %v1564
        %v2252 = vpop.f32.mrb[0].mxu0
        %v2253 = vadd.f32 %v1776, %v2252
        %v2254 = vpop.f32.mrb[0].mxu0
        %v2255 = vpop.f32.mrb[0].mxu0
        %v2256 = vadd.f32 %v1776, %v2255
        %v2257 = vpop.f32.mrb[0].mxu0
        %2258 = vmatprep.mubr.bf16.mxu0 %v1574
        %2259 = vmatmul.mubr.bf16.gmra.mrb[0].mxu0 %v1573
        %v2260 = vpop.f32.mrb[0].mxu0
        %v2261 = vadd.f32 %v1776, %v2260
        %v2262 = vpop.f32.mrb[0].mxu0
        %v2263 = vpop.f32.mrb[0].mxu0
        %v2264 = vadd.f32 %v1776, %v2263
        %v2265 = vpop.f32.mrb[0].mxu0
        %2266 = vmatprep.mubr.bf16.mxu0 %v1583
        %2267 = vmatmul.mubr.bf16.gmra.mrb[0].mxu0 %v1582
        %v2268 = vpop.f32.mrb[0].mxu0
        %v2269 = vadd.f32 %v1776, %v2268
        %v2270 = vpop.f32.mrb[0].mxu0
        %v2271 = vpop.f32.mrb[0].mxu0
        %v2272 = vadd.f32 %v1776, %v2271
        %v2273 = vpop.f32.mrb[0].mxu0
        %2274 = vmatprep.mubr.bf16.mxu0 %v1592
        %2275 = vmatmul.mubr.bf16.gmra.mrb[0].mxu0 %v1591
        %v2276 = vpop.f32.mrb[0].mxu0
        %v2277 = vadd.f32 %v1776, %v2276
        %v2278 = vpop.f32.mrb[0].mxu0
        %v2279 = vpop.f32.mrb[0].mxu0
        %v2280 = vadd.f32 %v1776, %v2279
        %v2281 = vpop.f32.mrb[0].mxu0
        %2282 = vmatprep.mubr.bf16.mxu0 %v1601
        %2283 = vmatmul.mubr.bf16.gmra.mrb[0].mxu0 %v1600
        %v2284 = vpop.f32.mrb[0].mxu0
        %v2285 = vadd.f32 %v1776, %v2284
        %v2286 = vpop.f32.mrb[0].mxu0
        %v2287 = vpop.f32.mrb[0].mxu0
        %v2288 = vadd.f32 %v1776, %v2287
        %v2289 = vpop.f32.mrb[0].mxu0
        %2290 = vmatprep.mubr.bf16.mxu0 %v1610
        %2291 = vmatmul.mubr.bf16.gmra.mrb[0].mxu0 %v1609
        %v2292 = vpop.f32.mrb[0].mxu0
        %v2293 = vadd.f32 %v1776, %v2292
        %v2294 = vpop.f32.mrb[0].mxu0
        %v2295 = vpop.f32.mrb[0].mxu0
        %v2296 = vadd.f32 %v1776, %v2295
        %v2297 = vpop.f32.mrb[0].mxu0
        %2298 = vmatprep.mubr.bf16.mxu0 %v1619
        %2299 = vmatmul.mubr.bf16.gmra.mrb[0].mxu0 %v1618
        %v2300 = vpop.f32.mrb[0].mxu0
        %v2301 = vadd.f32 %v1776, %v2300
        %v2302 = vpop.f32.mrb[0].mxu0
        %v2303 = vpop.f32.mrb[0].mxu0
        %v2304 = vadd.f32 %v1776, %v2303
        %v2305 = vpop.f32.mrb[0].mxu0
        %2306 = vdwg.mxu0
        %2307 = vmatprep.subr.bf16.mxu0 0
        %2308 = vmatpush1.bf16.msra.mxu0 %v2082
        %2309 = vmatprep.subr.bf16.mxu0 0
        %2310 = vmatpush1.bf16.msra.mxu0 %v2083
        %2311 = vmatprep.subr.bf16.mxu0 0
        %2312 = vmatpush1.bf16.msra.mxu0 %v2084
        %2313 = vmatprep.subr.bf16.mxu0 0
        %2314 = vmatpush1.bf16.msra.mxu0 %v2085
        %2315 = vmatprep.subr.bf16.mxu0 0
        %2316 = vmatpush1.bf16.msra.mxu0 %v2086
        %2317 = vmatprep.subr.bf16.mxu0 0
        %2318 = vmatpush1.bf16.msra.mxu0 %v2087
        %2319 = vmatprep.subr.bf16.mxu0 0
        %2320 = vmatpush1.bf16.msra.mxu0 %v2088
        %2321 = vmatprep.subr.bf16.mxu0 0
        %2322 = vmatpush1.bf16.msra.mxu0 %v2089
        %2323 = vmatprep.subr.bf16.mxu0 0
        %2324 = vmatpush1.bf16.msra.mxu0 %v2090
        %2325 = vmatprep.subr.bf16.mxu0 0
        %2326 = vmatpush1.bf16.msra.mxu0 %v2091
        %2327 = vmatprep.subr.bf16.mxu0 0
        %2328 = vmatpush1.bf16.msra.mxu0 %v2092
        %2329 = vmatprep.subr.bf16.mxu0 0
        %2330 = vmatpush1.bf16.msra.mxu0 %v2093
        %2331 = vmatprep.subr.bf16.mxu0 0
        %2332 = vmatpush1.bf16.msra.mxu0 %v2094
        %2333 = vmatprep.subr.bf16.mxu0 0
        %2334 = vmatpush1.bf16.msra.mxu0 %v2095
        %2335 = vmatprep.subr.bf16.mxu0 0
        %2336 = vmatpush1.bf16.msra.mxu0 %v2096
        %2337 = vmatprep.subr.bf16.mxu0 0
        %2338 = vmatpush1.bf16.msra.mxu0 %v2097
        %2339 = vmatprep.mubr.bf16.mxu0 %v1558
        %2340 = vmatmul.mubr.bf16.gmra.mrb[0].mxu0 %v1557
        %v2341 = vpop.f32.mrb[0].mxu0
        %v2342 = vadd.f32 %v2245, %v2341
        %v2343 = vpop.f32.mrb[0].mxu0
        %v2344 = vpop.f32.mrb[0].mxu0
        %v2345 = vadd.f32 %v2248, %v2344
        %v2346 = vpop.f32.mrb[0].mxu0
        %2347 = vmatprep.mubr.bf16.mxu0 %v1567
        %2348 = vmatmul.mubr.bf16.gmra.mrb[0].mxu0 %v1566
        %v2349 = vpop.f32.mrb[0].mxu0
        %v2350 = vadd.f32 %v2253, %v2349
        %v2351 = vpop.f32.mrb[0].mxu0
        %v2352 = vpop.f32.mrb[0].mxu0
        %v2353 = vadd.f32 %v2256, %v2352
        %v2354 = vpop.f32.mrb[0].mxu0
        %2355 = vmatprep.mubr.bf16.mxu0 %v1576
        %2356 = vmatmul.mubr.bf16.gmra.mrb[0].mxu0 %v1575
        %v2357 = vpop.f32.mrb[0].mxu0
        %v2358 = vadd.f32 %v2261, %v2357
        %v2359 = vpop.f32.mrb[0].mxu0
        %v2360 = vpop.f32.mrb[0].mxu0
        %v2361 = vadd.f32 %v2264, %v2360
        %v2362 = vpop.f32.mrb[0].mxu0
        %2363 = vmatprep.mubr.bf16.mxu0 %v1585
        %2364 = vmatmul.mubr.bf16.gmra.mrb[0].mxu0 %v1584
        %v2365 = vpop.f32.mrb[0].mxu0
        %v2366 = vadd.f32 %v2269, %v2365
        %v2367 = vpop.f32.mrb[0].mxu0
        %v2368 = vpop.f32.mrb[0].mxu0
        %v2369 = vadd.f32 %v2272, %v2368
        %v2370 = vpop.f32.mrb[0].mxu0
        %2371 = vmatprep.mubr.bf16.mxu0 %v1594
        %2372 = vmatmul.mubr.bf16.gmra.mrb[0].mxu0 %v1593
        %v2373 = vpop.f32.mrb[0].mxu0
        %v2374 = vadd.f32 %v2277, %v2373
        %v2375 = vpop.f32.mrb[0].mxu0
        %v2376 = vpop.f32.mrb[0].mxu0
        %v2377 = vadd.f32 %v2280, %v2376
        %v2378 = vpop.f32.mrb[0].mxu0
        %2379 = vmatprep.mubr.bf16.mxu0 %v1603
        %2380 = vmatmul.mubr.bf16.gmra.mrb[0].mxu0 %v1602
        %v2381 = vpop.f32.mrb[0].mxu0
        %v2382 = vadd.f32 %v2285, %v2381
        %v2383 = vpop.f32.mrb[0].mxu0
        %v2384 = vpop.f32.mrb[0].mxu0
        %v2385 = vadd.f32 %v2288, %v2384
        %v2386 = vpop.f32.mrb[0].mxu0
        %2387 = vmatprep.mubr.bf16.mxu0 %v1612
        %2388 = vmatmul.mubr.bf16.gmra.mrb[0].mxu0 %v1611
        %v2389 = vpop.f32.mrb[0].mxu0
        %v2390 = vadd.f32 %v2293, %v2389
        %v2391 = vpop.f32.mrb[0].mxu0
        %v2392 = vpop.f32.mrb[0].mxu0
        %v2393 = vadd.f32 %v2296, %v2392
        %v2394 = vpop.f32.mrb[0].mxu0
        %2395 = vmatprep.mubr.bf16.mxu0 %v1621
        %2396 = vmatmul.mubr.bf16.gmra.mrb[0].mxu0 %v1620
        %v2397 = vpop.f32.mrb[0].mxu0
        %v2398 = vadd.f32 %v2301, %v2397
        %v2399 = vpop.f32.mrb[0].mxu0
        %v2400 = vpop.f32.mrb[0].mxu0
        %v2401 = vadd.f32 %v2304, %v2400
        %v2402 = vpop.f32.mrb[0].mxu0
        %2403 = vdwg.mxu0
        %2404 = vmatprep.subr.bf16.mxu0 0
        %2405 = vmatpush1.bf16.msra.mxu0 %v2098
        %2406 = vmatprep.subr.bf16.mxu0 0
        %2407 = vmatpush1.bf16.msra.mxu0 %v2099
        %2408 = vmatprep.subr.bf16.mxu0 0
        %2409 = vmatpush1.bf16.msra.mxu0 %v2100
        %2410 = vmatprep.subr.bf16.mxu0 0
        %2411 = vmatpush1.bf16.msra.mxu0 %v2101
        %2412 = vmatprep.subr.bf16.mxu0 0
        %2413 = vmatpush1.bf16.msra.mxu0 %v2102
        %2414 = vmatprep.subr.bf16.mxu0 0
        %2415 = vmatpush1.bf16.msra.mxu0 %v2103
        %2416 = vmatprep.subr.bf16.mxu0 0
        %2417 = vmatpush1.bf16.msra.mxu0 %v2104
        %2418 = vmatprep.subr.bf16.mxu0 0
        %2419 = vmatpush1.bf16.msra.mxu0 %v2105
        %2420 = vmatprep.subr.bf16.mxu0 0
        %2421 = vmatpush1.bf16.msra.mxu0 %v2106
        %2422 = vmatprep.subr.bf16.mxu0 0
        %2423 = vmatpush1.bf16.msra.mxu0 %v2107
        %2424 = vmatprep.subr.bf16.mxu0 0
        %2425 = vmatpush1.bf16.msra.mxu0 %v2108
        %2426 = vmatprep.subr.bf16.mxu0 0
        %2427 = vmatpush1.bf16.msra.mxu0 %v2109
        %2428 = vmatprep.subr.bf16.mxu0 0
        %2429 = vmatpush1.bf16.msra.mxu0 %v2110
        %2430 = vmatprep.subr.bf16.mxu0 0
        %2431 = vmatpush1.bf16.msra.mxu0 %v2111
        %2432 = vmatprep.subr.bf16.mxu0 0
        %2433 = vmatpush1.bf16.msra.mxu0 %v2112
        %2434 = vmatprep.subr.bf16.mxu0 0
        %2435 = vmatpush1.bf16.msra.mxu0 %v2113
        %2436 = vmatprep.mubr.bf16.mxu0 %v1560
        %2437 = vmatmul.mubr.bf16.gmra.mrb[0].mxu0 %v1559
        %v2438 = vpop.f32.mrb[0].mxu0
        %v2439 = vadd.f32 %v2342, %v2438
        %v2440 = vpop.f32.mrb[0].mxu0
        %v2441 = vpop.f32.mrb[0].mxu0
        %v2442 = vadd.f32 %v2345, %v2441
        %v2443 = vpop.f32.mrb[0].mxu0
        %2444 = vmatprep.mubr.bf16.mxu0 %v1569
        %2445 = vmatmul.mubr.bf16.gmra.mrb[0].mxu0 %v1568
        %v2446 = vpop.f32.mrb[0].mxu0
        %v2447 = vadd.f32 %v2350, %v2446
        %v2448 = vpop.f32.mrb[0].mxu0
        %v2449 = vpop.f32.mrb[0].mxu0
        %v2450 = vadd.f32 %v2353, %v2449
        %v2451 = vpop.f32.mrb[0].mxu0
        %2452 = vmatprep.mubr.bf16.mxu0 %v1578
        %2453 = vmatmul.mubr.bf16.gmra.mrb[0].mxu0 %v1577
        %v2454 = vpop.f32.mrb[0].mxu0
        %v2455 = vadd.f32 %v2358, %v2454
        %v2456 = vpop.f32.mrb[0].mxu0
        %v2457 = vpop.f32.mrb[0].mxu0
        %v2458 = vadd.f32 %v2361, %v2457
        %v2459 = vpop.f32.mrb[0].mxu0
        %2460 = vmatprep.mubr.bf16.mxu0 %v1587
        %2461 = vmatmul.mubr.bf16.gmra.mrb[0].mxu0 %v1586
        %v2462 = vpop.f32.mrb[0].mxu0
        %v2463 = vadd.f32 %v2366, %v2462
        %v2464 = vpop.f32.mrb[0].mxu0
        %v2465 = vpop.f32.mrb[0].mxu0
        %v2466 = vadd.f32 %v2369, %v2465
        %v2467 = vpop.f32.mrb[0].mxu0
        %2468 = vmatprep.mubr.bf16.mxu0 %v1596
        %2469 = vmatmul.mubr.bf16.gmra.mrb[0].mxu0 %v1595
        %v2470 = vpop.f32.mrb[0].mxu0
        %v2471 = vadd.f32 %v2374, %v2470
        %v2472 = vpop.f32.mrb[0].mxu0
        %v2473 = vpop.f32.mrb[0].mxu0
        %v2474 = vadd.f32 %v2377, %v2473
        %v2475 = vpop.f32.mrb[0].mxu0
        %2476 = vmatprep.mubr.bf16.mxu0 %v1605
        %2477 = vmatmul.mubr.bf16.gmra.mrb[0].mxu0 %v1604
        %v2478 = vpop.f32.mrb[0].mxu0
        %v2479 = vadd.f32 %v2382, %v2478
        %v2480 = vpop.f32.mrb[0].mxu0
        %v2481 = vpop.f32.mrb[0].mxu0
        %v2482 = vadd.f32 %v2385, %v2481
        %v2483 = vpop.f32.mrb[0].mxu0
        %2484 = vmatprep.mubr.bf16.mxu0 %v1614
        %2485 = vmatmul.mubr.bf16.gmra.mrb[0].mxu0 %v1613
        %v2486 = vpop.f32.mrb[0].mxu0
        %v2487 = vadd.f32 %v2390, %v2486
        %v2488 = vpop.f32.mrb[0].mxu0
        %v2489 = vpop.f32.mrb[0].mxu0
        %v2490 = vadd.f32 %v2393, %v2489
        %v2491 = vpop.f32.mrb[0].mxu0
        %2492 = vmatprep.mubr.bf16.mxu0 %v1623
        %2493 = vmatmul.mubr.bf16.gmra.mrb[0].mxu0 %v1622
        %v2494 = vpop.f32.mrb[0].mxu0
        %v2495 = vadd.f32 %v2398, %v2494
        %v2496 = vpop.f32.mrb[0].mxu0
        %v2497 = vpop.f32.mrb[0].mxu0
        %v2498 = vadd.f32 %v2401, %v2497
        %v2499 = vpop.f32.mrb[0].mxu0
        %2500 = vdwg.mxu0
        %2501 = vmatprep.subr.bf16.mxu0 0
        %2502 = vmatpush1.bf16.msra.mxu0 %v2114
        %2503 = vmatprep.subr.bf16.mxu0 0
        %2504 = vmatpush1.bf16.msra.mxu0 %v2115
        %2505 = vmatprep.subr.bf16.mxu0 0
        %2506 = vmatpush1.bf16.msra.mxu0 %v2116
        %2507 = vmatprep.subr.bf16.mxu0 0
        %2508 = vmatpush1.bf16.msra.mxu0 %v2117
        %2509 = vmatprep.subr.bf16.mxu0 0
        %2510 = vmatpush1.bf16.msra.mxu0 %v2118
        %2511 = vmatprep.subr.bf16.mxu0 0
        %2512 = vmatpush1.bf16.msra.mxu0 %v2119
        %2513 = vmatprep.subr.bf16.mxu0 0
        %2514 = vmatpush1.bf16.msra.mxu0 %v2120
        %2515 = vmatprep.subr.bf16.mxu0 0
        %2516 = vmatpush1.bf16.msra.mxu0 %v2121
        %2517 = vmatprep.subr.bf16.mxu0 0
        %2518 = vmatpush1.bf16.msra.mxu0 %v2122
        %2519 = vmatprep.subr.bf16.mxu0 0
        %2520 = vmatpush1.bf16.msra.mxu0 %v2123
        %2521 = vmatprep.subr.bf16.mxu0 0
        %2522 = vmatpush1.bf16.msra.mxu0 %v2124
        %2523 = vmatprep.subr.bf16.mxu0 0
        %2524 = vmatpush1.bf16.msra.mxu0 %v2125
        %2525 = vmatprep.subr.bf16.mxu0 0
        %2526 = vmatpush1.bf16.msra.mxu0 %v2126
        %2527 = vmatprep.subr.bf16.mxu0 0
        %2528 = vmatpush1.bf16.msra.mxu0 %v2127
        %2529 = vmatprep.subr.bf16.mxu0 0
        %2530 = vmatpush1.bf16.msra.mxu0 %v2128
        %2531 = vmatprep.subr.bf16.mxu0 0
        %2532 = vmatpush1.bf16.msra.mxu0 %v2129
        %2533 = vmatprep.mubr.bf16.mxu0 %v1562
        %2534 = vmatmul.mubr.bf16.gmra.mrb[0].mxu0 %v1561
        %v2535 = vpop.f32.mrb[0].mxu0
        %v2536 = vadd.f32 %v2439, %v2535
        %v2537 = vpop.f32.mrb[0].mxu0
        %v2538 = vpop.f32.mrb[0].mxu0
        %v2539 = vadd.f32 %v2442, %v2538
        %v2540 = vpop.f32.mrb[0].mxu0
        %2541 = vmatprep.mubr.bf16.mxu0 %v1571
        %2542 = vmatmul.mubr.bf16.gmra.mrb[0].mxu0 %v1570
        %v2543 = vpop.f32.mrb[0].mxu0
        %v2544 = vadd.f32 %v2447, %v2543
        %v2545 = vpop.f32.mrb[0].mxu0
        %v2546 = vpop.f32.mrb[0].mxu0
        %v2547 = vadd.f32 %v2450, %v2546
        %v2548 = vpop.f32.mrb[0].mxu0
        %2549 = vmatprep.mubr.bf16.mxu0 %v1580
        %2550 = vmatmul.mubr.bf16.gmra.mrb[0].mxu0 %v1579
        %v2551 = vpop.f32.mrb[0].mxu0
        %v2552 = vadd.f32 %v2455, %v2551
        %v2553 = vpop.f32.mrb[0].mxu0
        %v2554 = vpop.f32.mrb[0].mxu0
        %v2555 = vadd.f32 %v2458, %v2554
        %v2556 = vpop.f32.mrb[0].mxu0
        %2557 = vmatprep.mubr.bf16.mxu0 %v1589
        %2558 = vmatmul.mubr.bf16.gmra.mrb[0].mxu0 %v1588
        %v2559 = vpop.f32.mrb[0].mxu0
        %v2560 = vadd.f32 %v2463, %v2559
        %v2561 = vpop.f32.mrb[0].mxu0
        %v2562 = vpop.f32.mrb[0].mxu0
        %v2563 = vadd.f32 %v2466, %v2562
        %v2564 = vpop.f32.mrb[0].mxu0
        %2565 = vmatprep.mubr.bf16.mxu0 %v1598
        %2566 = vmatmul.mubr.bf16.gmra.mrb[0].mxu0 %v1597
        %v2567 = vpop.f32.mrb[0].mxu0
        %v2568 = vadd.f32 %v2471, %v2567
        %v2569 = vpop.f32.mrb[0].mxu0
        %v2570 = vpop.f32.mrb[0].mxu0
        %v2571 = vadd.f32 %v2474, %v2570
        %v2572 = vpop.f32.mrb[0].mxu0
        %2573 = vmatprep.mubr.bf16.mxu0 %v1607
        %2574 = vmatmul.mubr.bf16.gmra.mrb[0].mxu0 %v1606
        %v2575 = vpop.f32.mrb[0].mxu0
        %v2576 = vadd.f32 %v2479, %v2575
        %v2577 = vpop.f32.mrb[0].mxu0
        %v2578 = vpop.f32.mrb[0].mxu0
        %v2579 = vadd.f32 %v2482, %v2578
        %v2580 = vpop.f32.mrb[0].mxu0
        %2581 = vmatprep.mubr.bf16.mxu0 %v1616
        %2582 = vmatmul.mubr.bf16.gmra.mrb[0].mxu0 %v1615
        %v2583 = vpop.f32.mrb[0].mxu0
        %v2584 = vadd.f32 %v2487, %v2583
        %v2585 = vpop.f32.mrb[0].mxu0
        %v2586 = vpop.f32.mrb[0].mxu0
        %v2587 = vadd.f32 %v2490, %v2586
        %v2588 = vpop.f32.mrb[0].mxu0
        %2589 = vmatprep.mubr.bf16.mxu0 %v1625
        %2590 = vmatmul.mubr.bf16.gmra.mrb[0].mxu0 %v1624
        %v2591 = vpop.f32.mrb[0].mxu0
        %v2592 = vadd.f32 %v2495, %v2591
        %v2593 = vpop.f32.mrb[0].mxu0
        %v2594 = vpop.f32.mrb[0].mxu0
        %v2595 = vadd.f32 %v2498, %v2594
        %v2596 = vpop.f32.mrb[0].mxu0
        %2597 = vdwg.mxu0
        %2598 = vmatprep.subr.bf16.mxu0 0
        %2599 = vmatpush1.bf16.msra.mxu0 %v2130
        %2600 = vmatprep.subr.bf16.mxu0 0
        %2601 = vmatpush1.bf16.msra.mxu0 %v2131
        %2602 = vmatprep.subr.bf16.mxu0 0
        %2603 = vmatpush1.bf16.msra.mxu0 %v2132
        %2604 = vmatprep.subr.bf16.mxu0 0
        %2605 = vmatpush1.bf16.msra.mxu0 %v2133
        %2606 = vmatprep.subr.bf16.mxu0 0
        %2607 = vmatpush1.bf16.msra.mxu0 %v2134
        %2608 = vmatprep.subr.bf16.mxu0 0
        %2609 = vmatpush1.bf16.msra.mxu0 %v2135
        %2610 = vmatprep.subr.bf16.mxu0 0
        %2611 = vmatpush1.bf16.msra.mxu0 %v2136
        %2612 = vmatprep.subr.bf16.mxu0 0
        %2613 = vmatpush1.bf16.msra.mxu0 %v2137
        %2614 = vmatprep.subr.bf16.mxu0 0
        %2615 = vmatpush1.bf16.msra.mxu0 0
        %2616 = vmatprep.subr.bf16.mxu0 0
        %2617 = vmatpush1.bf16.msra.mxu0 0
        %2618 = vmatprep.subr.bf16.mxu0 0
        %2619 = vmatpush1.bf16.msra.mxu0 0
        %2620 = vmatprep.subr.bf16.mxu0 0
        %2621 = vmatpush1.bf16.msra.mxu0 0
        %2622 = vmatprep.subr.bf16.mxu0 0
        %2623 = vmatpush1.bf16.msra.mxu0 0
        %2624 = vmatprep.subr.bf16.mxu0 0
        %2625 = vmatpush1.bf16.msra.mxu0 0
        %2626 = vmatprep.subr.bf16.mxu0 0
        %2627 = vmatpush1.bf16.msra.mxu0 0
        %2628 = vmatprep.subr.bf16.mxu0 0
        %2629 = vmatpush1.bf16.msra.mxu0 0
        %2630 = vmatprep.mubr.bf16.mxu0 0
        %2631 = vmatmul.mubr.bf16.gmra.mrb[0].mxu0 %v1563
        %v2632 = vpop.f32.mrb[0].mxu0
        %v2633 = vadd.f32 %v2536, %v2632
        %v2634 = vpop.f32.mrb[0].mxu0
        %v2635 = vpop.f32.mrb[0].mxu0
        %v2636 = vadd.f32 %v2539, %v2635
        %v2637 = vpop.f32.mrb[0].mxu0
        %2638 = vmatprep.mubr.bf16.mxu0 0
        %2639 = vmatmul.mubr.bf16.gmra.mrb[0].mxu0 %v1572
        %v2640 = vpop.f32.mrb[0].mxu0
        %v2641 = vadd.f32 %v2544, %v2640
        %v2642 = vpop.f32.mrb[0].mxu0
        %v2643 = vpop.f32.mrb[0].mxu0
        %v2644 = vadd.f32 %v2547, %v2643
        %v2645 = vpop.f32.mrb[0].mxu0
        %2646 = vmatprep.mubr.bf16.mxu0 0
        %2647 = vmatmul.mubr.bf16.gmra.mrb[0].mxu0 %v1581
        %v2648 = vpop.f32.mrb[0].mxu0
        %v2649 = vadd.f32 %v2552, %v2648
        %v2650 = vpop.f32.mrb[0].mxu0
        %v2651 = vpop.f32.mrb[0].mxu0
        %v2652 = vadd.f32 %v2555, %v2651
        %v2653 = vpop.f32.mrb[0].mxu0
        %2654 = vmatprep.mubr.bf16.mxu0 0
        %2655 = vmatmul.mubr.bf16.gmra.mrb[0].mxu0 %v1590
        %v2656 = vpop.f32.mrb[0].mxu0
        %v2657 = vadd.f32 %v2560, %v2656
        %v2658 = vpop.f32.mrb[0].mxu0
        %v2659 = vpop.f32.mrb[0].mxu0
        %v2660 = vadd.f32 %v2563, %v2659
        %v2661 = vpop.f32.mrb[0].mxu0
        %2662 = vmatprep.mubr.bf16.mxu0 0
        %2663 = vmatmul.mubr.bf16.gmra.mrb[0].mxu0 %v1599
        %v2664 = vpop.f32.mrb[0].mxu0
        %v2665 = vadd.f32 %v2568, %v2664
        %v2666 = vpop.f32.mrb[0].mxu0
        %v2667 = vpop.f32.mrb[0].mxu0
        %v2668 = vadd.f32 %v2571, %v2667
        %v2669 = vpop.f32.mrb[0].mxu0
        %2670 = vmatprep.mubr.bf16.mxu0 0
        %2671 = vmatmul.mubr.bf16.gmra.mrb[0].mxu0 %v1608
        %v2672 = vpop.f32.mrb[0].mxu0
        %v2673 = vadd.f32 %v2576, %v2672
        %v2674 = vpop.f32.mrb[0].mxu0
        %v2675 = vpop.f32.mrb[0].mxu0
        %v2676 = vadd.f32 %v2579, %v2675
        %v2677 = vpop.f32.mrb[0].mxu0
        %2678 = vmatprep.mubr.bf16.mxu0 0
        %2679 = vmatmul.mubr.bf16.gmra.mrb[0].mxu0 %v1617
        %v2680 = vpop.f32.mrb[0].mxu0
        %v2681 = vadd.f32 %v2584, %v2680
        %v2682 = vpop.f32.mrb[0].mxu0
        %v2683 = vpop.f32.mrb[0].mxu0
        %v2684 = vadd.f32 %v2587, %v2683
        %v2685 = vpop.f32.mrb[0].mxu0
        %2686 = vmatprep.mubr.bf16.mxu0 0
        %2687 = vmatmul.mubr.bf16.gmra.mrb[0].mxu0 %v1626
        %v2688 = vpop.f32.mrb[0].mxu0
        %v2689 = vadd.f32 %v2592, %v2688
        %v2690 = vpop.f32.mrb[0].mxu0
        %v2691 = vpop.f32.mrb[0].mxu0
        %v2692 = vadd.f32 %v2595, %v2691
        %v2693 = vpop.f32.mrb[0].mxu0
        %2694 = vdwg.mxu0
        %2695 = vst [vmem:[%s303] sm:$0xff] %v2633
        %2696 = vst [vmem:[%s303 + $0x8] sm:$0xff] %v2636
        %2697 = vst [vmem:[%s303 + $0x10] sm:$0xff] %v2641
        %2698 = vst [vmem:[%s303 + $0x18] sm:$0xff] %v2644
        %2699 = vst [vmem:[%s303 + $0x20] sm:$0xff] %v2649
        %2700 = vst [vmem:[%s303 + $0x28] sm:$0xff] %v2652
        %2701 = vst [vmem:[%s303 + $0x30] sm:$0xff] %v2657
        %2702 = vst [vmem:[%s303 + $0x38] sm:$0xff] %v2660
        %2703 = vst [vmem:[%s303 + $0x40] sm:$0xff] %v2665
        %2704 = vst [vmem:[%s303 + $0x48] sm:$0xff] %v2668
        %2705 = vst [vmem:[%s303 + $0x50] sm:$0xff] %v2673
        %2706 = vst [vmem:[%s303 + $0x58] sm:$0xff] %v2676
        %2707 = vst [vmem:[%s303 + $0x60] sm:$0xff] %v2681
        %2708 = vst [vmem:[%s303 + $0x68] sm:$0xff] %v2684
        %2709 = vst [vmem:[%s303 + $0x70] sm:$0xff] %v2689
        %2710 = vst [vmem:[%s303 + $0x78] sm:$0xff] %v2692
        %s2711 = sand.u32 %s161, 1
        %s2712 = scalar_lea.sflag [#allocation4], %s2711
        %s2713 = sand.u32 %s161, 1
        %s2714 = smul.addr %s2713, 128
        %s2715 = scalar_lea.vmem [#allocation3], %s2714
        // Predicated region
        $region37: #{tpu_custom_call.1} parent=35 // pred_check
          %p2716 = pneg %p171
        $region38: #{tpu_custom_call.1} parent=35 // pred_check_branch
          %2718 = sbr.rel (%p2716) target = $region40
        $region39: #{tpu_custom_call.1} parent=35 // pred_region
          %s2719 = smul.u32 8, %s25
          %s2721 = ssub.s32 2048, 2048
          %2722 = vsyncadd %s2712, %s2721
          %s2723 = smul.addr %s2719, 2
          %s2724 = sadd.s32 %s23, %s2723
          %s2725 = smul.addr %s24, 32
          %s2726 = sadd.s32 %s2724, %s2725
          %s2727 = smul.addr %s2726, 128
          %s2728 = scalar_lea.hbm %s4, %s2727
          %s2729 = sshll.u32 %s2715, 4
          %s2730 = int_to_ptr.vmem [resolvable:$true] %s2729
          %2735 = dma.vmem_to_hbm [thread:$0]  %s2730, 2048, %s2728, %s2712, 128, 128, 8
        $region40: #{tpu_custom_call.1} parent=35 // pred_fallthru
          _
      $region36: #{tpu_custom_call.1} parent=5 // pred_fallthru
        _
      %p2736 = scmp.le.s32.totalorder 2, %s13
      // Predicated region
      $region41: #{tpu_custom_call.1} parent=5 // pred_check
        %p2737 = pneg %p2736
      $region42: #{tpu_custom_call.1} parent=5 // pred_check_branch
        %2739 = sbr.rel (%p2737) target = $region44
      $region43: #{tpu_custom_call.1} parent=5 // pred_region
        %s2740 = ssub.s32 %s13, 2
        // Predicated region
        $region45: #{tpu_custom_call.1} parent=43 // pred_check
          %p2741 = pneg %p177
        $region46: #{tpu_custom_call.1} parent=43 // pred_check_branch
          %2743 = sbr.rel (%p2741) target = $region48
        $region47: #{tpu_custom_call.1} parent=43 // pred_region
          %s2744 = sand.u32 %s162, 1
          %s2745 = scalar_lea.sflag [#allocation4], %s2744
          %s2746 = sand.u32 %s162, 1
          %s2747 = smul.addr %s2746, 128
          %s2748 = scalar_lea.vmem [#allocation3], %s2747
          %2749 = dma.done %s2745, 2048
        $region48: #{tpu_custom_call.1} parent=43 // pred_fallthru
          _
      $region44: #{tpu_custom_call.1} parent=5 // pred_fallthru
        _
    $region6: #{tpu_custom_call.1} parent=1 // loop_footer
      %s17 = sadd.s32 1, %s13
    $region7: #{tpu_custom_call.1} parent=1 // loop_footer_branch
      %12 = sbr.rel target = $region3
    $region8: #{tpu_custom_call.1} parent=1 // loop_exit
      _
    %2750 = vsyncpa [#allocation4], 1
    %s2751 = scalar_lea.sflag [#allocation4], 1
    %2752 = vsyncpa %s2751, 1

</llo_original>
